<compile_context>
chip_gen: v7x
topology: tpu7x:2x2x1
jax: 0.10.0
libtpu: 0.0.40
codegen_flags: <defaults>
</compile_context>

<pallas_src>
import functools
import math

import jax
import jax.numpy as jnp
from jax.experimental import pallas as pl
from jax.experimental.pallas import tpu as pltpu


_HEAD_PAD = 64  # lane-padded column block per head (class | bbox) -> 128 total


# ----------------------------------------------------------------------------
# Fused Pallas kernel: whole DETR forward for one batch element
# ----------------------------------------------------------------------------

def _detr_kernel(src_ref, pos_ref, pw_ref, pb_ref, query_ref,
                 w1_ref, b1_ref, w2_ref, b2_ref,
                 cw_ref, cb_ref,
                 bw1_ref, bb1_ref, bw2_ref, bb2_ref, bw3_ref, bb3_ref,
                 out_ref, *, num_layers, scale):
    """input_proj + keys(+pos) + all decoder layers + heads, VMEM-resident."""
    S, D = pos_ref.shape

    # ---- input_proj: 1x1 conv as (S, Kp) @ (Kp, D) matmul + bias ----
    x = src_ref[0].astype(jnp.bfloat16)                 # (S, Kp)
    memory = jnp.dot(x, pw_ref[...],
                     preferred_element_type=jnp.float32) + pb_ref[...]  # (S, D)
    keys = memory + pos_ref[...]                        # (S, D) f32, never to HBM

    # Hoisted out of the layer loop: one transpose + one bf16 cast per batch.
    keys_t = keys.T.astype(jnp.bfloat16)                # (D, S)
    mem_bf = memory.astype(jnp.bfloat16)                # (S, D)

    query = query_ref[...]                              # (Q, D) f32
    tgt = jnp.zeros_like(query)

    # TODO(synk): at real DETR sizes (D=256, F=2048, L=6) on v7x, stream the
    # FFN weights per layer (pipeline_mode=pl.Buffered(1) / layer grid axis)
    # instead of keeping all layers resident; at toy sizes this is ~20 KiB.
    for l in range(num_layers):                         # static unroll
        q_in = ((tgt + query) * scale).astype(jnp.bfloat16)
        s = jnp.dot(q_in, keys_t, preferred_element_type=jnp.float32)   # (Q, S)
        m = jnp.max(s, axis=-1, keepdims=True)
        p = jnp.exp(s - m)
        denom = jnp.sum(p, axis=-1, keepdims=True)
        p = p * pl.reciprocal(denom, approx=True)       # EUP divide
        attn = jnp.dot(p.astype(jnp.bfloat16), mem_bf,
                       preferred_element_type=jnp.float32)               # (Q, D)
        tgt = tgt + attn
        # FFN with residual (weights stacked along layer axis, static index).
        h = jnp.dot(tgt.astype(jnp.bfloat16), w1_ref[l],
                    preferred_element_type=jnp.float32) + b1_ref[l]
        h = jnp.maximum(h, 0.0)
        h2 = jnp.dot(h.astype(jnp.bfloat16), w2_ref[l],
                     preferred_element_type=jnp.float32) + b2_ref[l]
        tgt = tgt + h2

    # ---- fused heads epilogue: class Linear + bbox MLP(relu, relu, sigmoid)
    hs = tgt.astype(jnp.bfloat16)                       # (Q, D)
    logits = jnp.dot(hs, cw_ref[...],
                     preferred_element_type=jnp.float32) + cb_ref[...]
    h = jnp.dot(hs, bw1_ref[...],
                preferred_element_type=jnp.float32) + bb1_ref[...]
    h = jnp.maximum(h, 0.0)
    h = jnp.dot(h.astype(jnp.bfloat16), bw2_ref[...],
                preferred_element_type=jnp.float32) + bb2_ref[...]
    h = jnp.maximum(h, 0.0)
    boxes = jax.nn.sigmoid(
        jnp.dot(h.astype(jnp.bfloat16), bw3_ref[...],
                preferred_element_type=jnp.float32) + bb3_ref[...])
    # Single lane-dense 128-wide store: [class_pad(64) | bbox_pad(64)].
    out_ref[0] = jnp.concatenate([logits, boxes], axis=-1).astype(out_ref.dtype)


def pallas_detr(src_pad, pos, pw, pb, query, w1, b1, w2, b2,
                cw, cb, bw1, bb1, bw2, bb2, bw3, bb3):
    """src_pad: (B, S, Kp); pos: (S, D); FFN weights stacked (L, ...)."""
    B, S, Kp = src_pad.shape
    D = pos.shape[1]
    Q = query.shape[0]
    L, _, F = w1.shape
    scale = 1.0 / math.sqrt(D)
    return pl.pallas_call(
        functools.partial(_detr_kernel, num_layers=L, scale=scale),
        out_shape=jax.ShapeDtypeStruct((B, Q, 2 * _HEAD_PAD), jnp.float32),
        grid_spec=pltpu.PrefetchScalarGridSpec(
            num_scalar_prefetch=0,
            grid=(B,),
            in_specs=[
                pl.BlockSpec((1, S, Kp), lambda b: (b, 0, 0)),   # src (per batch)
                pl.BlockSpec((S, D), lambda b: (0, 0)),          # pos
                pl.BlockSpec((Kp, D), lambda b: (0, 0)),         # input_proj W (bf16)
                pl.BlockSpec((1, D), lambda b: (0, 0)),          # input_proj b
                pl.BlockSpec((Q, D), lambda b: (0, 0)),          # query embed
                pl.BlockSpec((L, D, F), lambda b: (0, 0, 0)),    # dec FFN w1 (bf16)
                pl.BlockSpec((L, 1, F), lambda b: (0, 0, 0)),    # dec FFN b1
                pl.BlockSpec((L, F, D), lambda b: (0, 0, 0)),    # dec FFN w2 (bf16)
                pl.BlockSpec((L, 1, D), lambda b: (0, 0, 0)),    # dec FFN b2
                pl.BlockSpec((D, _HEAD_PAD), lambda b: (0, 0)),  # class W (bf16, padded)
                pl.BlockSpec((1, _HEAD_PAD), lambda b: (0, 0)),  # class b (padded)
                pl.BlockSpec((D, D), lambda b: (0, 0)),          # bbox w1 (bf16)
                pl.BlockSpec((1, D), lambda b: (0, 0)),          # bbox b1
                pl.BlockSpec((D, D), lambda b: (0, 0)),          # bbox w2 (bf16)
                pl.BlockSpec((1, D), lambda b: (0, 0)),          # bbox b2
                pl.BlockSpec((D, _HEAD_PAD), lambda b: (0, 0)),  # bbox w3 (bf16, padded)
                pl.BlockSpec((1, _HEAD_PAD), lambda b: (0, 0)),  # bbox b3 (padded)
            ],
            out_specs=pl.BlockSpec((1, Q, 2 * _HEAD_PAD), lambda b: (b, 0, 0)),
        ),
        compiler_params=pltpu.CompilerParams(
            dimension_semantics=("parallel",)),
    )(src_pad, pos, pw, pb, query, w1, b1, w2, b2,
      cw, cb, bw1, bb1, bw2, bb2, bw3, bb3)


# ----------------------------------------------------------------------------
# Synthetic backbone pieces (glue, plain JAX)
# ----------------------------------------------------------------------------

def sine_pos_embedding_flat(D, H, W, temperature=10000.0):
    """DETR-style PositionEmbeddingSine, returned flat as (H*W, D)."""
    num_pos_feats = D // 2
    y_embed = jnp.broadcast_to(
        (jnp.arange(H, dtype=jnp.float32) + 1.0)[:, None], (H, W))
    x_embed = jnp.broadcast_to(
        (jnp.arange(W, dtype=jnp.float32) + 1.0)[None, :], (H, W))
    dim_t = jnp.arange(num_pos_feats, dtype=jnp.float32)
    dim_t = temperature ** (2.0 * jnp.floor(dim_t / 2.0) / num_pos_feats)
    pos_x = x_embed[:, :, None] / dim_t
    pos_y = y_embed[:, :, None] / dim_t
    pos_x = jnp.stack([jnp.sin(pos_x[:, :, 0::2]), jnp.cos(pos_x[:, :, 1::2])],
                      axis=3).reshape(H, W, num_pos_feats)
    pos_y = jnp.stack([jnp.sin(pos_y[:, :, 0::2]), jnp.cos(pos_y[:, :, 1::2])],
                      axis=3).reshape(H, W, num_pos_feats)
    pos = jnp.concatenate([pos_y, pos_x], axis=2)       # (H, W, D)
    return pos.reshape(H * W, D).astype(jnp.float32)


# ----------------------------------------------------------------------------
# Parameters
# ----------------------------------------------------------------------------

def init_params(key, num_channels=4, hidden_dim=32, num_classes=4,
                num_queries=8, num_dec_layers=2, ffn_dim=64):
    def linear_init(k, fan_in, fan_out):
        k1, k2 = jax.random.split(k)
        bound = 1.0 / math.sqrt(fan_in)
        w = jax.random.uniform(k1, (fan_in, fan_out), jnp.float32, -bound, bound)
        b = jax.random.uniform(k2, (1, fan_out), jnp.float32, -bound, bound)
        return w, b

    n_keys = 6 + 2 * num_dec_layers
    keys = list(jax.random.split(key, n_keys))
    params = {}
    # input_proj: 1x1 Conv2d(num_channels -> hidden_dim) == per-pixel linear
    params["input_proj_w"], params["input_proj_b"] = linear_init(
        keys.pop(), num_channels, hidden_dim)
    # class_embed: Linear(hidden_dim, num_classes + 1)
    params["class_w"], params["class_b"] = linear_init(
        keys.pop(), hidden_dim, num_classes + 1)
    # bbox_embed: MLP(hidden_dim, hidden_dim, 4, num_layers=3)
    params["bbox_w1"], params["bbox_b1"] = linear_init(keys.pop(), hidden_dim, hidden_dim)
    params["bbox_w2"], params["bbox_b2"] = linear_init(keys.pop(), hidden_dim, hidden_dim)
    params["bbox_w3"], params["bbox_b3"] = linear_init(keys.pop(), hidden_dim, 4)
    # query_embed: Embedding(num_queries, hidden_dim)
    params["query_embed"] = jax.random.normal(
        keys.pop(), (num_queries, hidden_dim), jnp.float32)
    # Synthetic transformer decoder layers (transformer is dependency-injected
    # in the PyTorch DETR; this is a simplified deterministic stand-in).
    w1s, b1s, w2s, b2s = [], [], [], []
    for _ in range(num_dec_layers):
        w1, b1 = linear_init(keys.pop(), hidden_dim, ffn_dim)
        w2, b2 = linear_init(keys.pop(), ffn_dim, hidden_dim)
        w1s.append(w1); b1s.append(b1); w2s.append(w2); b2s.append(b2)
    params["dec_ffn_w1"] = jnp.stack(w1s, axis=0)   # (L, D, F)
    params["dec_ffn_b1"] = jnp.stack(b1s, axis=0)   # (L, 1, F)
    params["dec_ffn_w2"] = jnp.stack(w2s, axis=0)   # (L, F, D)
    params["dec_ffn_b2"] = jnp.stack(b2s, axis=0)   # (L, 1, D)
    return params


# ----------------------------------------------------------------------------
# DETR forward
# ----------------------------------------------------------------------------

def detr_forward(params, samples):
    """samples: (B, C, H, W) float32 (NCHW, PyTorch convention)."""
    B, C, H, W = samples.shape
    D = params["input_proj_w"].shape[1]
    S = H * W
    Q = params["query_embed"].shape[0]

    # TODO(synk): NestedTensor / nested_tensor_from_tensor_list has no Pallas
    # equivalent; a dense tensor with an all-False padding mask is used, so the
    # attention mask bias is statically zero and dropped from the kernel.
    # Synthetic backbone: identity features + sine positional embedding.
    pos = sine_pos_embedding_flat(D, H, W)                      # (S, D)

    # NCHW -> NHWC -> (B, S, C); pad channels up to one full sublane (8).
    Kp = max(8, C)
    src_nhwc = jnp.transpose(samples, (0, 2, 3, 1)).reshape(B, S, C)
    src_pad = jnp.pad(src_nhwc, ((0, 0), (0, 0), (0, Kp - C)))
    pw = jnp.pad(params["input_proj_w"],
                 ((0, Kp - C), (0, 0))).astype(jnp.bfloat16)

    # Head weights padded to one lane-dense 128-wide packed output block.
    num_cls = params["class_w"].shape[1]                        # num_classes + 1
    cw = jnp.pad(params["class_w"],
                 ((0, 0), (0, _HEAD_PAD - num_cls))).astype(jnp.bfloat16)
    cb = jnp.pad(params["class_b"], ((0, 0), (0, _HEAD_PAD - num_cls)))
    bw3 = jnp.pad(params["bbox_w3"],
                  ((0, 0), (0, _HEAD_PAD - 4))).astype(jnp.bfloat16)
    bb3 = jnp.pad(params["bbox_b3"], ((0, 0), (0, _HEAD_PAD - 4)))

    packed = pallas_detr(
        src_pad, pos, pw, params["input_proj_b"], params["query_embed"],
        params["dec_ffn_w1"].astype(jnp.bfloat16), params["dec_ffn_b1"],
        params["dec_ffn_w2"].astype(jnp.bfloat16), params["dec_ffn_b2"],
        cw, cb,
        params["bbox_w1"].astype(jnp.bfloat16), params["bbox_b1"],
        params["bbox_w2"].astype(jnp.bfloat16), params["bbox_b2"],
        bw3, bb3)                                               # (B, Q, 128)

    outputs_class = packed[:, :, :num_cls]                      # (B, Q, C+1)
    outputs_coord = packed[:, :, _HEAD_PAD:_HEAD_PAD + 4]       # (B, Q, 4)
    return {"pred_logits": outputs_class, "pred_boxes": outputs_coord}


# ----------------------------------------------------------------------------
# Main
# ----------------------------------------------------------------------------

if __name__ == "__main__":
    key = jax.random.PRNGKey(0)
    pkey, xkey = jax.random.split(key)

    B, C, H, W = 2, 4, 16, 16
    hidden_dim, num_classes, num_queries = 32, 4, 8

    params = init_params(pkey, num_channels=C, hidden_dim=hidden_dim,
                         num_classes=num_classes, num_queries=num_queries,
                         num_dec_layers=2, ffn_dim=2 * hidden_dim)
    samples = jax.random.normal(xkey, (B, C, H, W), jnp.float32)

    out = jax.jit(detr_forward)(params, samples)
    out = jax.block_until_ready(out)

    assert out["pred_logits"].shape == (B, num_queries, num_classes + 1)
    assert out["pred_boxes"].shape == (B, num_queries, 4)
    assert bool(jnp.all(jnp.isfinite(out["pred_logits"])))
    assert bool(jnp.all((out["pred_boxes"] >= 0.0) & (out["pred_boxes"] <= 1.0)))

    print("KERNEL_OK")
</pallas_src>

<mosaic_0001>
module attributes {stable_mosaic.version = 11 : i64} {
  func.func @_detr_kernel(%arg0: i32, %arg1: memref<1x256x8xf32, #tpu.memory_space<vmem>>, %arg2: memref<256x32xf32, #tpu.memory_space<vmem>>, %arg3: memref<8x32xbf16, #tpu.memory_space<vmem>>, %arg4: memref<1x32xf32, #tpu.memory_space<vmem>>, %arg5: memref<8x32xf32, #tpu.memory_space<vmem>>, %arg6: memref<2x32x64xbf16, #tpu.memory_space<vmem>>, %arg7: memref<2x1x64xf32, #tpu.memory_space<vmem>>, %arg8: memref<2x64x32xbf16, #tpu.memory_space<vmem>>, %arg9: memref<2x1x32xf32, #tpu.memory_space<vmem>>, %arg10: memref<32x64xbf16, #tpu.memory_space<vmem>>, %arg11: memref<1x64xf32, #tpu.memory_space<vmem>>, %arg12: memref<32x32xbf16, #tpu.memory_space<vmem>>, %arg13: memref<1x32xf32, #tpu.memory_space<vmem>>, %arg14: memref<32x32xbf16, #tpu.memory_space<vmem>>, %arg15: memref<1x32xf32, #tpu.memory_space<vmem>>, %arg16: memref<32x64xbf16, #tpu.memory_space<vmem>>, %arg17: memref<1x64xf32, #tpu.memory_space<vmem>>, %arg18: memref<1x8x128xf32, #tpu.memory_space<vmem>>) attributes {dimension_semantics = [#tpu.dimension_semantics<parallel>], iteration_bounds = array<i64: 2>, scalar_prefetch = 0 : i64, scratch_operands = 0 : i64, tpu.core_type = #tpu.core_type<tc>, window_params = [{transform_indices = @transform_0, window_bounds = array<i64: 1, 256, 8>}, {pipeline_mode = #tpu.pipeline_mode<synchronous>, transform_indices = @transform_1, window_bounds = array<i64: 256, 32>}, {pipeline_mode = #tpu.pipeline_mode<synchronous>, transform_indices = @transform_2, window_bounds = array<i64: 8, 32>}, {pipeline_mode = #tpu.pipeline_mode<synchronous>, transform_indices = @transform_3, window_bounds = array<i64: 1, 32>}, {pipeline_mode = #tpu.pipeline_mode<synchronous>, transform_indices = @transform_4, window_bounds = array<i64: 8, 32>}, {pipeline_mode = #tpu.pipeline_mode<synchronous>, transform_indices = @transform_5, window_bounds = array<i64: 2, 32, 64>}, {pipeline_mode = #tpu.pipeline_mode<synchronous>, transform_indices = @transform_6, window_bounds = array<i64: 2, 1, 64>}, {pipeline_mode = #tpu.pipeline_mode<synchronous>, transform_indices = @transform_7, window_bounds = array<i64: 2, 64, 32>}, {pipeline_mode = #tpu.pipeline_mode<synchronous>, transform_indices = @transform_8, window_bounds = array<i64: 2, 1, 32>}, {pipeline_mode = #tpu.pipeline_mode<synchronous>, transform_indices = @transform_9, window_bounds = array<i64: 32, 64>}, {pipeline_mode = #tpu.pipeline_mode<synchronous>, transform_indices = @transform_10, window_bounds = array<i64: 1, 64>}, {pipeline_mode = #tpu.pipeline_mode<synchronous>, transform_indices = @transform_11, window_bounds = array<i64: 32, 32>}, {pipeline_mode = #tpu.pipeline_mode<synchronous>, transform_indices = @transform_12, window_bounds = array<i64: 1, 32>}, {pipeline_mode = #tpu.pipeline_mode<synchronous>, transform_indices = @transform_13, window_bounds = array<i64: 32, 32>}, {pipeline_mode = #tpu.pipeline_mode<synchronous>, transform_indices = @transform_14, window_bounds = array<i64: 1, 32>}, {pipeline_mode = #tpu.pipeline_mode<synchronous>, transform_indices = @transform_15, window_bounds = array<i64: 32, 64>}, {pipeline_mode = #tpu.pipeline_mode<synchronous>, transform_indices = @transform_16, window_bounds = array<i64: 1, 64>}, {transform_indices = @transform_17, window_bounds = array<i64: 1, 8, 128>}]} {
    %c0 = arith.constant 0 : index
    %c0_0 = arith.constant 0 : index
    %c0_1 = arith.constant 0 : index
    %0 = vector.load %arg1[%c0, %c0_0, %c0_1] : memref<1x256x8xf32, #tpu.memory_space<vmem>>, vector<1x256x8xf32>
    %1 = vector.shape_cast %0 : vector<1x256x8xf32> to vector<256x8xf32>
    %2 = arith.truncf %1 : vector<256x8xf32> to vector<256x8xbf16>
    %c0_2 = arith.constant 0 : index
    %c0_3 = arith.constant 0 : index
    %3 = vector.load %arg3[%c0_2, %c0_3] : memref<8x32xbf16, #tpu.memory_space<vmem>>, vector<8x32xbf16>
    %cst = arith.constant dense<0.000000e+00> : vector<256x32xf32>
    %4 = tpu.matmul %2, %3, %cst {dimension_numbers = #tpu.dot_dimension_numbers<[1], [0], [0], [1], [0, 0, 1, 1], [], []>} : vector<256x8xbf16>, vector<8x32xbf16>, vector<256x32xf32> -> vector<256x32xf32>
    %c0_4 = arith.constant 0 : index
    %c0_5 = arith.constant 0 : index
    %5 = vector.load %arg4[%c0_4, %c0_5] : memref<1x32xf32, #tpu.memory_space<vmem>>, vector<1x32xf32>
    %6 = vector.broadcast %5 : vector<1x32xf32> to vector<256x32xf32>
    %7 = arith.addf %4, %6 : vector<256x32xf32>
    %c0_6 = arith.constant 0 : index
    %c0_7 = arith.constant 0 : index
    %8 = vector.load %arg2[%c0_6, %c0_7] : memref<256x32xf32, #tpu.memory_space<vmem>>, vector<256x32xf32>
    %9 = arith.addf %7, %8 : vector<256x32xf32>
    %10 = tpu.transpose %9, [1, 0] : vector<256x32xf32> -> vector<32x256xf32>
    %11 = arith.truncf %10 : vector<32x256xf32> to vector<32x256xbf16>
    %12 = arith.truncf %7 : vector<256x32xf32> to vector<256x32xbf16>
    %c0_8 = arith.constant 0 : index
    %c0_9 = arith.constant 0 : index
    %13 = vector.load %arg5[%c0_8, %c0_9] : memref<8x32xf32, #tpu.memory_space<vmem>>, vector<8x32xf32>
    %cst_10 = arith.constant 0.000000e+00 : f32
    %14 = vector.broadcast %cst_10 : f32 to vector<8x32xf32>
    %15 = arith.addf %14, %13 : vector<8x32xf32>
    %cst_11 = arith.constant 0.176776692 : f32
    %16 = vector.broadcast %cst_11 : f32 to vector<8x32xf32>
    %17 = arith.mulf %15, %16 : vector<8x32xf32>
    %18 = arith.truncf %17 : vector<8x32xf32> to vector<8x32xbf16>
    %cst_12 = arith.constant dense<0.000000e+00> : vector<8x256xf32>
    %19 = tpu.matmul %18, %11, %cst_12 {dimension_numbers = #tpu.dot_dimension_numbers<[1], [0], [0], [1], [0, 0, 1, 1], [], []>} : vector<8x32xbf16>, vector<32x256xbf16>, vector<8x256xf32> -> vector<8x256xf32>
    %cst_13 = arith.constant dense<0xFF800000> : vector<8xf32>
    %20 = vector.multi_reduction <maximumf>, %19, %cst_13 [1] : vector<8x256xf32> to vector<8xf32>
    %21 = vector.shape_cast %20 : vector<8xf32> to vector<8x1xf32>
    %22 = vector.broadcast %21 : vector<8x1xf32> to vector<8x256xf32>
    %23 = arith.subf %19, %22 : vector<8x256xf32>
    %24 = math.exp %23 : vector<8x256xf32>
    %cst_14 = arith.constant dense<0.000000e+00> : vector<8xf32>
    %25 = vector.multi_reduction <add>, %24, %cst_14 [1] : vector<8x256xf32> to vector<8xf32>
    %26 = vector.shape_cast %25 : vector<8xf32> to vector<8x1xf32>
    %27 = tpu.reciprocal %26 {approx = true} : vector<8x1xf32> -> vector<8x1xf32>
    %28 = vector.broadcast %27 : vector<8x1xf32> to vector<8x256xf32>
    %29 = arith.mulf %24, %28 : vector<8x256xf32>
    %30 = arith.truncf %29 : vector<8x256xf32> to vector<8x256xbf16>
    %cst_15 = arith.constant dense<0.000000e+00> : vector<8x32xf32>
    %31 = tpu.matmul %30, %12, %cst_15 {dimension_numbers = #tpu.dot_dimension_numbers<[1], [0], [0], [1], [0, 0, 1, 1], [], []>} : vector<8x256xbf16>, vector<256x32xbf16>, vector<8x32xf32> -> vector<8x32xf32>
    %32 = arith.addf %14, %31 : vector<8x32xf32>
    %33 = arith.truncf %32 : vector<8x32xf32> to vector<8x32xbf16>
    %c0_16 = arith.constant 0 : index
    %c0_17 = arith.constant 0 : index
    %c0_18 = arith.constant 0 : index
    %34 = vector.load %arg6[%c0_16, %c0_17, %c0_18] : memref<2x32x64xbf16, #tpu.memory_space<vmem>>, vector<1x32x64xbf16>
    %35 = vector.shape_cast %34 : vector<1x32x64xbf16> to vector<32x64xbf16>
    %cst_19 = arith.constant dense<0.000000e+00> : vector<8x64xf32>
    %36 = tpu.matmul %33, %35, %cst_19 {dimension_numbers = #tpu.dot_dimension_numbers<[1], [0], [0], [1], [0, 0, 1, 1], [], []>} : vector<8x32xbf16>, vector<32x64xbf16>, vector<8x64xf32> -> vector<8x64xf32>
    %c0_20 = arith.constant 0 : index
    %c0_21 = arith.constant 0 : index
    %c0_22 = arith.constant 0 : index
    %37 = vector.load %arg7[%c0_20, %c0_21, %c0_22] : memref<2x1x64xf32, #tpu.memory_space<vmem>>, vector<1x1x64xf32>
    %38 = vector.shape_cast %37 : vector<1x1x64xf32> to vector<1x64xf32>
    %39 = vector.broadcast %38 : vector<1x64xf32> to vector<8x64xf32>
    %40 = arith.addf %36, %39 : vector<8x64xf32>
    %cst_23 = arith.constant 0.000000e+00 : f32
    %41 = vector.broadcast %cst_23 : f32 to vector<8x64xf32>
    %42 = arith.maximumf %40, %41 : vector<8x64xf32>
    %43 = arith.truncf %42 : vector<8x64xf32> to vector<8x64xbf16>
    %c0_24 = arith.constant 0 : index
    %c0_25 = arith.constant 0 : index
    %c0_26 = arith.constant 0 : index
    %44 = vector.load %arg8[%c0_24, %c0_25, %c0_26] : memref<2x64x32xbf16, #tpu.memory_space<vmem>>, vector<1x64x32xbf16>
    %45 = vector.shape_cast %44 : vector<1x64x32xbf16> to vector<64x32xbf16>
    %cst_27 = arith.constant dense<0.000000e+00> : vector<8x32xf32>
    %46 = tpu.matmul %43, %45, %cst_27 {dimension_numbers = #tpu.dot_dimension_numbers<[1], [0], [0], [1], [0, 0, 1, 1], [], []>} : vector<8x64xbf16>, vector<64x32xbf16>, vector<8x32xf32> -> vector<8x32xf32>
    %c0_28 = arith.constant 0 : index
    %c0_29 = arith.constant 0 : index
    %c0_30 = arith.constant 0 : index
    %47 = vector.load %arg9[%c0_28, %c0_29, %c0_30] : memref<2x1x32xf32, #tpu.memory_space<vmem>>, vector<1x1x32xf32>
    %48 = vector.shape_cast %47 : vector<1x1x32xf32> to vector<1x32xf32>
    %49 = vector.broadcast %48 : vector<1x32xf32> to vector<8x32xf32>
    %50 = arith.addf %46, %49 : vector<8x32xf32>
    %51 = arith.addf %32, %50 : vector<8x32xf32>
    %52 = arith.addf %51, %13 : vector<8x32xf32>
    %cst_31 = arith.constant 0.176776692 : f32
    %53 = vector.broadcast %cst_31 : f32 to vector<8x32xf32>
    %54 = arith.mulf %52, %53 : vector<8x32xf32>
    %55 = arith.truncf %54 : vector<8x32xf32> to vector<8x32xbf16>
    %cst_32 = arith.constant dense<0.000000e+00> : vector<8x256xf32>
    %56 = tpu.matmul %55, %11, %cst_32 {dimension_numbers = #tpu.dot_dimension_numbers<[1], [0], [0], [1], [0, 0, 1, 1], [], []>} : vector<8x32xbf16>, vector<32x256xbf16>, vector<8x256xf32> -> vector<8x256xf32>
    %cst_33 = arith.constant dense<0xFF800000> : vector<8xf32>
    %57 = vector.multi_reduction <maximumf>, %56, %cst_33 [1] : vector<8x256xf32> to vector<8xf32>
    %58 = vector.shape_cast %57 : vector<8xf32> to vector<8x1xf32>
    %59 = vector.broadcast %58 : vector<8x1xf32> to vector<8x256xf32>
    %60 = arith.subf %56, %59 : vector<8x256xf32>
    %61 = math.exp %60 : vector<8x256xf32>
    %cst_34 = arith.constant dense<0.000000e+00> : vector<8xf32>
    %62 = vector.multi_reduction <add>, %61, %cst_34 [1] : vector<8x256xf32> to vector<8xf32>
    %63 = vector.shape_cast %62 : vector<8xf32> to vector<8x1xf32>
    %64 = tpu.reciprocal %63 {approx = true} : vector<8x1xf32> -> vector<8x1xf32>
    %65 = vector.broadcast %64 : vector<8x1xf32> to vector<8x256xf32>
    %66 = arith.mulf %61, %65 : vector<8x256xf32>
    %67 = arith.truncf %66 : vector<8x256xf32> to vector<8x256xbf16>
    %cst_35 = arith.constant dense<0.000000e+00> : vector<8x32xf32>
    %68 = tpu.matmul %67, %12, %cst_35 {dimension_numbers = #tpu.dot_dimension_numbers<[1], [0], [0], [1], [0, 0, 1, 1], [], []>} : vector<8x256xbf16>, vector<256x32xbf16>, vector<8x32xf32> -> vector<8x32xf32>
    %69 = arith.addf %51, %68 : vector<8x32xf32>
    %70 = arith.truncf %69 : vector<8x32xf32> to vector<8x32xbf16>
    %c1 = arith.constant 1 : index
    %c0_36 = arith.constant 0 : index
    %c0_37 = arith.constant 0 : index
    %71 = vector.load %arg6[%c1, %c0_36, %c0_37] : memref<2x32x64xbf16, #tpu.memory_space<vmem>>, vector<1x32x64xbf16>
    %72 = vector.shape_cast %71 : vector<1x32x64xbf16> to vector<32x64xbf16>
    %cst_38 = arith.constant dense<0.000000e+00> : vector<8x64xf32>
    %73 = tpu.matmul %70, %72, %cst_38 {dimension_numbers = #tpu.dot_dimension_numbers<[1], [0], [0], [1], [0, 0, 1, 1], [], []>} : vector<8x32xbf16>, vector<32x64xbf16>, vector<8x64xf32> -> vector<8x64xf32>
    %c1_39 = arith.constant 1 : index
    %c0_40 = arith.constant 0 : index
    %c0_41 = arith.constant 0 : index
    %74 = vector.load %arg7[%c1_39, %c0_40, %c0_41] : memref<2x1x64xf32, #tpu.memory_space<vmem>>, vector<1x1x64xf32>
    %75 = vector.shape_cast %74 : vector<1x1x64xf32> to vector<1x64xf32>
    %76 = vector.broadcast %75 : vector<1x64xf32> to vector<8x64xf32>
    %77 = arith.addf %73, %76 : vector<8x64xf32>
    %cst_42 = arith.constant 0.000000e+00 : f32
    %78 = vector.broadcast %cst_42 : f32 to vector<8x64xf32>
    %79 = arith.maximumf %77, %78 : vector<8x64xf32>
    %80 = arith.truncf %79 : vector<8x64xf32> to vector<8x64xbf16>
    %c1_43 = arith.constant 1 : index
    %c0_44 = arith.constant 0 : index
    %c0_45 = arith.constant 0 : index
    %81 = vector.load %arg8[%c1_43, %c0_44, %c0_45] : memref<2x64x32xbf16, #tpu.memory_space<vmem>>, vector<1x64x32xbf16>
    %82 = vector.shape_cast %81 : vector<1x64x32xbf16> to vector<64x32xbf16>
    %cst_46 = arith.constant dense<0.000000e+00> : vector<8x32xf32>
    %83 = tpu.matmul %80, %82, %cst_46 {dimension_numbers = #tpu.dot_dimension_numbers<[1], [0], [0], [1], [0, 0, 1, 1], [], []>} : vector<8x64xbf16>, vector<64x32xbf16>, vector<8x32xf32> -> vector<8x32xf32>
    %c1_47 = arith.constant 1 : index
    %c0_48 = arith.constant 0 : index
    %c0_49 = arith.constant 0 : index
    %84 = vector.load %arg9[%c1_47, %c0_48, %c0_49] : memref<2x1x32xf32, #tpu.memory_space<vmem>>, vector<1x1x32xf32>
    %85 = vector.shape_cast %84 : vector<1x1x32xf32> to vector<1x32xf32>
    %86 = vector.broadcast %85 : vector<1x32xf32> to vector<8x32xf32>
    %87 = arith.addf %83, %86 : vector<8x32xf32>
    %88 = arith.addf %69, %87 : vector<8x32xf32>
    %89 = arith.truncf %88 : vector<8x32xf32> to vector<8x32xbf16>
    %c0_50 = arith.constant 0 : index
    %c0_51 = arith.constant 0 : index
    %90 = vector.load %arg10[%c0_50, %c0_51] : memref<32x64xbf16, #tpu.memory_space<vmem>>, vector<32x64xbf16>
    %cst_52 = arith.constant dense<0.000000e+00> : vector<8x64xf32>
    %91 = tpu.matmul %89, %90, %cst_52 {dimension_numbers = #tpu.dot_dimension_numbers<[1], [0], [0], [1], [0, 0, 1, 1], [], []>} : vector<8x32xbf16>, vector<32x64xbf16>, vector<8x64xf32> -> vector<8x64xf32>
    %c0_53 = arith.constant 0 : index
    %c0_54 = arith.constant 0 : index
    %92 = vector.load %arg11[%c0_53, %c0_54] : memref<1x64xf32, #tpu.memory_space<vmem>>, vector<1x64xf32>
    %93 = vector.broadcast %92 : vector<1x64xf32> to vector<8x64xf32>
    %94 = arith.addf %91, %93 : vector<8x64xf32>
    %c0_55 = arith.constant 0 : index
    %c0_56 = arith.constant 0 : index
    %95 = vector.load %arg12[%c0_55, %c0_56] : memref<32x32xbf16, #tpu.memory_space<vmem>>, vector<32x32xbf16>
    %cst_57 = arith.constant dense<0.000000e+00> : vector<8x32xf32>
    %96 = tpu.matmul %89, %95, %cst_57 {dimension_numbers = #tpu.dot_dimension_numbers<[1], [0], [0], [1], [0, 0, 1, 1], [], []>} : vector<8x32xbf16>, vector<32x32xbf16>, vector<8x32xf32> -> vector<8x32xf32>
    %c0_58 = arith.constant 0 : index
    %c0_59 = arith.constant 0 : index
    %97 = vector.load %arg13[%c0_58, %c0_59] : memref<1x32xf32, #tpu.memory_space<vmem>>, vector<1x32xf32>
    %98 = vector.broadcast %97 : vector<1x32xf32> to vector<8x32xf32>
    %99 = arith.addf %96, %98 : vector<8x32xf32>
    %cst_60 = arith.constant 0.000000e+00 : f32
    %100 = vector.broadcast %cst_60 : f32 to vector<8x32xf32>
    %101 = arith.maximumf %99, %100 : vector<8x32xf32>
    %102 = arith.truncf %101 : vector<8x32xf32> to vector<8x32xbf16>
    %c0_61 = arith.constant 0 : index
    %c0_62 = arith.constant 0 : index
    %103 = vector.load %arg14[%c0_61, %c0_62] : memref<32x32xbf16, #tpu.memory_space<vmem>>, vector<32x32xbf16>
    %cst_63 = arith.constant dense<0.000000e+00> : vector<8x32xf32>
    %104 = tpu.matmul %102, %103, %cst_63 {dimension_numbers = #tpu.dot_dimension_numbers<[1], [0], [0], [1], [0, 0, 1, 1], [], []>} : vector<8x32xbf16>, vector<32x32xbf16>, vector<8x32xf32> -> vector<8x32xf32>
    %c0_64 = arith.constant 0 : index
    %c0_65 = arith.constant 0 : index
    %105 = vector.load %arg15[%c0_64, %c0_65] : memref<1x32xf32, #tpu.memory_space<vmem>>, vector<1x32xf32>
    %106 = vector.broadcast %105 : vector<1x32xf32> to vector<8x32xf32>
    %107 = arith.addf %104, %106 : vector<8x32xf32>
    %cst_66 = arith.constant 0.000000e+00 : f32
    %108 = vector.broadcast %cst_66 : f32 to vector<8x32xf32>
    %109 = arith.maximumf %107, %108 : vector<8x32xf32>
    %110 = arith.truncf %109 : vector<8x32xf32> to vector<8x32xbf16>
    %c0_67 = arith.constant 0 : index
    %c0_68 = arith.constant 0 : index
    %111 = vector.load %arg16[%c0_67, %c0_68] : memref<32x64xbf16, #tpu.memory_space<vmem>>, vector<32x64xbf16>
    %cst_69 = arith.constant dense<0.000000e+00> : vector<8x64xf32>
    %112 = tpu.matmul %110, %111, %cst_69 {dimension_numbers = #tpu.dot_dimension_numbers<[1], [0], [0], [1], [0, 0, 1, 1], [], []>} : vector<8x32xbf16>, vector<32x64xbf16>, vector<8x64xf32> -> vector<8x64xf32>
    %c0_70 = arith.constant 0 : index
    %c0_71 = arith.constant 0 : index
    %113 = vector.load %arg17[%c0_70, %c0_71] : memref<1x64xf32, #tpu.memory_space<vmem>>, vector<1x64xf32>
    %114 = vector.broadcast %113 : vector<1x64xf32> to vector<8x64xf32>
    %115 = arith.addf %112, %114 : vector<8x64xf32>
    %116 = arith.negf %115 : vector<8x64xf32>
    %117 = math.exp %116 : vector<8x64xf32>
    %cst_72 = arith.constant 1.000000e+00 : f32
    %118 = vector.broadcast %cst_72 : f32 to vector<8x64xf32>
    %119 = arith.addf %118, %117 : vector<8x64xf32>
    %120 = arith.divf %118, %119 : vector<8x64xf32>
    %121 = tpu.concatenate %94, %120 in 1 : vector<8x64xf32>, vector<8x64xf32> -> vector<8x128xf32>
    %c0_73 = arith.constant 0 : index
    %c0_74 = arith.constant 0 : index
    %c0_75 = arith.constant 0 : index
    %122 = vector.load %arg18[%c0_73, %c0_74, %c0_75] : memref<1x8x128xf32, #tpu.memory_space<vmem>>, vector<1x8x128xf32>
    %123 = vector.shape_cast %122 : vector<1x8x128xf32> to vector<8x128xf32>
    %124 = vector.shape_cast %121 : vector<8x128xf32> to vector<1x8x128xf32>
    tpu.vector_store %arg18[%c0_73, %c0_74, %c0_75], %124 {strides = array<i32>} : memref<1x8x128xf32, #tpu.memory_space<vmem>>, vector<1x8x128xf32>,
    return
  }
  func.func @transform_0(%arg0: i32) -> (i32, i32, i32) {
    %c0_i32 = arith.constant 0 : i32
    %c0_i32_0 = arith.constant 0 : i32
    %c0_i32_1 = arith.constant 0 : i32
    return %arg0, %c0_i32, %c0_i32_0 : i32, i32, i32
  }
  func.func @transform_1(%arg0: i32) -> (i32, i32) {
    %c0_i32 = arith.constant 0 : i32
    %c0_i32_0 = arith.constant 0 : i32
    %c0_i32_1 = arith.constant 0 : i32
    return %c0_i32, %c0_i32_0 : i32, i32
  }
  func.func @transform_2(%arg0: i32) -> (i32, i32) {
    %c0_i32 = arith.constant 0 : i32
    %c0_i32_0 = arith.constant 0 : i32
    %c0_i32_1 = arith.constant 0 : i32
    return %c0_i32, %c0_i32_0 : i32, i32
  }
  func.func @transform_3(%arg0: i32) -> (i32, i32) {
    %c0_i32 = arith.constant 0 : i32
    %c0_i32_0 = arith.constant 0 : i32
    %c0_i32_1 = arith.constant 0 : i32
    return %c0_i32, %c0_i32_0 : i32, i32
  }
  func.func @transform_4(%arg0: i32) -> (i32, i32) {
    %c0_i32 = arith.constant 0 : i32
    %c0_i32_0 = arith.constant 0 : i32
    %c0_i32_1 = arith.constant 0 : i32
    return %c0_i32, %c0_i32_0 : i32, i32
  }
  func.func @transform_5(%arg0: i32) -> (i32, i32, i32) {
    %c0_i32 = arith.constant 0 : i32
    %c0_i32_0 = arith.constant 0 : i32
    %c0_i32_1 = arith.constant 0 : i32
    %c0_i32_2 = arith.constant 0 : i32
    return %c0_i32, %c0_i32_0, %c0_i32_1 : i32, i32, i32
  }
  func.func @transform_6(%arg0: i32) -> (i32, i32, i32) {
    %c0_i32 = arith.constant 0 : i32
    %c0_i32_0 = arith.constant 0 : i32
    %c0_i32_1 = arith.constant 0 : i32
    %c0_i32_2 = arith.constant 0 : i32
    return %c0_i32, %c0_i32_0, %c0_i32_1 : i32, i32, i32
  }
  func.func @transform_7(%arg0: i32) -> (i32, i32, i32) {
    %c0_i32 = arith.constant 0 : i32
    %c0_i32_0 = arith.constant 0 : i32
    %c0_i32_1 = arith.constant 0 : i32
    %c0_i32_2 = arith.constant 0 : i32
    return %c0_i32, %c0_i32_0, %c0_i32_1 : i32, i32, i32
  }
  func.func @transform_8(%arg0: i32) -> (i32, i32, i32) {
    %c0_i32 = arith.constant 0 : i32
    %c0_i32_0 = arith.constant 0 : i32
    %c0_i32_1 = arith.constant 0 : i32
    %c0_i32_2 = arith.constant 0 : i32
    return %c0_i32, %c0_i32_0, %c0_i32_1 : i32, i32, i32
  }
  func.func @transform_9(%arg0: i32) -> (i32, i32) {
    %c0_i32 = arith.constant 0 : i32
    %c0_i32_0 = arith.constant 0 : i32
    %c0_i32_1 = arith.constant 0 : i32
    return %c0_i32, %c0_i32_0 : i32, i32
  }
  func.func @transform_10(%arg0: i32) -> (i32, i32) {
    %c0_i32 = arith.constant 0 : i32
    %c0_i32_0 = arith.constant 0 : i32
    %c0_i32_1 = arith.constant 0 : i32
    return %c0_i32, %c0_i32_0 : i32, i32
  }
  func.func @transform_11(%arg0: i32) -> (i32, i32) {
    %c0_i32 = arith.constant 0 : i32
    %c0_i32_0 = arith.constant 0 : i32
    %c0_i32_1 = arith.constant 0 : i32
    return %c0_i32, %c0_i32_0 : i32, i32
  }
  func.func @transform_12(%arg0: i32) -> (i32, i32) {
    %c0_i32 = arith.constant 0 : i32
    %c0_i32_0 = arith.constant 0 : i32
    %c0_i32_1 = arith.constant 0 : i32
    return %c0_i32, %c0_i32_0 : i32, i32
  }
  func.func @transform_13(%arg0: i32) -> (i32, i32) {
    %c0_i32 = arith.constant 0 : i32
    %c0_i32_0 = arith.constant 0 : i32
    %c0_i32_1 = arith.constant 0 : i32
    return %c0_i32, %c0_i32_0 : i32, i32
  }
  func.func @transform_14(%arg0: i32) -> (i32, i32) {
    %c0_i32 = arith.constant 0 : i32
    %c0_i32_0 = arith.constant 0 : i32
    %c0_i32_1 = arith.constant 0 : i32
    return %c0_i32, %c0_i32_0 : i32, i32
  }
  func.func @transform_15(%arg0: i32) -> (i32, i32) {
    %c0_i32 = arith.constant 0 : i32
    %c0_i32_0 = arith.constant 0 : i32
    %c0_i32_1 = arith.constant 0 : i32
    return %c0_i32, %c0_i32_0 : i32, i32
  }
  func.func @transform_16(%arg0: i32) -> (i32, i32) {
    %c0_i32 = arith.constant 0 : i32
    %c0_i32_0 = arith.constant 0 : i32
    %c0_i32_1 = arith.constant 0 : i32
    return %c0_i32, %c0_i32_0 : i32, i32
  }
  func.func @transform_17(%arg0: i32) -> (i32, i32, i32) {
    %c0_i32 = arith.constant 0 : i32
    %c0_i32_0 = arith.constant 0 : i32
    %c0_i32_1 = arith.constant 0 : i32
    return %arg0, %c0_i32, %c0_i32_0 : i32, i32, i32
  }
}

</mosaic_0001>

<llo_original>
// kernel: detr_forward.1
$region0: #{detr_forward.1}
  #allocation0 [shape = 'u32[]', space=smem, size = 0x4, offset = 0x4, fixed_abs, tag = 'smem constant byte address 0x4 - core index']
  #allocation1 [shape = 'u32[144,128]{1,0:T(1,128)}', space=vmem, size = 0x12000, scoped, tag = 'internal scratch']
  %s0 = inlined_call_operand.vmem [shape: f32[2,256,8], index: 0, kind: input, shape index: {}]
  %s1 = inlined_call_operand.vmem [shape: f32[256,32], index: 1, kind: input, shape index: {}]
  %s2 = inlined_call_operand.vmem [shape: bf16[8,32], index: 2, kind: input, shape index: {}]
  %s3 = inlined_call_operand.vmem [shape: f32[1,32], index: 3, kind: input, shape index: {}]
  %s4 = inlined_call_operand.vmem [shape: f32[8,32], index: 4, kind: input, shape index: {}]
  %s5 = inlined_call_operand.vmem [shape: bf16[2,32,64], index: 5, kind: input, shape index: {}]
  %s6 = inlined_call_operand.vmem [shape: f32[2,1,64], index: 6, kind: input, shape index: {}]
  %s7 = inlined_call_operand.vmem [shape: bf16[2,64,32], index: 7, kind: input, shape index: {}]
  %s8 = inlined_call_operand.vmem [shape: f32[2,1,32], index: 8, kind: input, shape index: {}]
  %s9 = inlined_call_operand.vmem [shape: bf16[32,64], index: 9, kind: input, shape index: {}]
  %s10 = inlined_call_operand.vmem [shape: f32[1,64], index: 10, kind: input, shape index: {}]
  %s11 = inlined_call_operand.vmem [shape: bf16[32,32], index: 11, kind: input, shape index: {}]
  %s12 = inlined_call_operand.vmem [shape: f32[1,32], index: 12, kind: input, shape index: {}]
  %s13 = inlined_call_operand.vmem [shape: bf16[32,32], index: 13, kind: input, shape index: {}]
  %s14 = inlined_call_operand.vmem [shape: f32[1,32], index: 14, kind: input, shape index: {}]
  %s15 = inlined_call_operand.vmem [shape: bf16[32,64], index: 15, kind: input, shape index: {}]
  %s16 = inlined_call_operand.vmem [shape: f32[1,64], index: 16, kind: input, shape index: {}]
  %s17 = inlined_call_operand.vmem [shape: f32[2,8,128], index: 17, kind: output, shape index: {}]
  %s18 = sld [smem:[#allocation0]]
  $region101: #{detr_forward.1} parent=0
    _
  %s20 = ssub.s32 1, %s18
  %s21 = scalar_select 0, %s20, %s18
  loop: start=0, step=1, limit=4
  $region2: #{detr_forward.1} parent=0 // loop_pre_header
    _
  $region3: #{detr_forward.1} parent=0 // loop_header
    %s23 = sphi 0, %s27
    %p24 = scmp.ge.s32.totalorder %s23, 4
    %s33 = sphi 0, %s35
    %s36 = sphi 0, %s33
    %s37 = sphi 0, %s36
    %s53 = sphi 0, %s37
    %s57 = sphi 0, %s57
    %s59 = sphi 0, %s57
    %s60 = sphi 0, %s59
    %s74 = sphi 0, %s60
    %s78 = sphi 0, %s78
    %s80 = sphi 0, %s78
    %s81 = sphi 0, %s80
    %s95 = sphi 0, %s81
    %s99 = sphi 0, %s99
    %s101 = sphi 0, %s99
    %s102 = sphi 0, %s101
    %s116 = sphi 0, %s102
    %s120 = sphi 0, %s120
    %s122 = sphi 0, %s120
    %s123 = sphi 0, %s122
    %s137 = sphi 0, %s123
    %s141 = sphi 0, %s141
    %s143 = sphi 0, %s141
    %s144 = sphi 0, %s143
    %s158 = sphi 0, %s144
    %s162 = sphi 0, %s162
    %s164 = sphi 0, %s162
    %s165 = sphi 0, %s164
    %s179 = sphi 0, %s165
    %s183 = sphi 0, %s183
    %s185 = sphi 0, %s183
    %s186 = sphi 0, %s185
    %s200 = sphi 0, %s186
    %s204 = sphi 0, %s204
    %s206 = sphi 0, %s204
    %s207 = sphi 0, %s206
    %s221 = sphi 0, %s207
    %s225 = sphi 0, %s225
    %s227 = sphi 0, %s225
    %s228 = sphi 0, %s227
    %s242 = sphi 0, %s228
    %s246 = sphi 0, %s246
    %s248 = sphi 0, %s246
    %s249 = sphi 0, %s248
    %s263 = sphi 0, %s249
    %s267 = sphi 0, %s267
    %s269 = sphi 0, %s267
    %s270 = sphi 0, %s269
    %s284 = sphi 0, %s270
    %s288 = sphi 0, %s288
    %s290 = sphi 0, %s288
    %s291 = sphi 0, %s290
    %s305 = sphi 0, %s291
    %s309 = sphi 0, %s309
    %s311 = sphi 0, %s309
    %s312 = sphi 0, %s311
    %s326 = sphi 0, %s312
    %s330 = sphi 0, %s330
    %s332 = sphi 0, %s330
    %s333 = sphi 0, %s332
    %s347 = sphi 0, %s333
    %s351 = sphi 0, %s351
    %s353 = sphi 0, %s351
    %s354 = sphi 0, %s353
    %s368 = sphi 0, %s354
    %s372 = sphi 0, %s372
    %s374 = sphi 0, %s372
    %s375 = sphi 0, %s374
    %s389 = sphi 0, %s375
    %s395 = sphi 0, %s397
    %s398 = sphi 0, %s395
    %s399 = sphi 0, %s398
    %s415 = sphi 0, %s399
  $region4: #{detr_forward.1} parent=0 // loop_header_branch
    %26 = sbr.rel (%p24) target = $region8
  $region5: #{detr_forward.1} parent=0 // loop_body
    %s28 = ssub.s32 %s23, 1
    %s29 = ssub.s32 %s23, 2
    %s30 = sadd.s32 %s23, 1
    %s31 = ssub.s32 %s23, %s30
    %p32 = scmp.eq.s32.totalorder %s31, 0
    %s34 = sadd.s32 %s33, 1
    %s35 = scalar_select %p32, %s33, %s34
    %p38 = pneg %p32
    %p39 = scmp.eq.s32.totalorder %s23, 1
    %p40 = por %p38, %p39
    %p41 = scmp.ne.s32.totalorder %s33, %s36
    %p42 = scmp.eq.s32.totalorder %s23, 0
    %p43 = por %p41, %p42
    %p44 = scmp.ne.s32.totalorder %s33, %s36
    %p45 = scmp.eq.s32.totalorder %s28, 1
    %p46 = por %p44, %p45
    %p47 = scmp.ne.s32.totalorder %s36, %s37
    %p48 = scmp.eq.s32.totalorder %s28, 0
    %p49 = por %p47, %p48
    %p50 = scmp.ne.s32.totalorder %s36, %s37
    %p51 = scmp.eq.s32.totalorder %s29, 1
    %p52 = por %p50, %p51
    %p54 = scmp.ne.s32.totalorder %s37, %s53
    %p55 = scmp.eq.s32.totalorder %s29, 0
    %p56 = por %p54, %p55
    %s58 = sadd.s32 %s57, 1
    %p61 = scmp.eq.s32.totalorder %s23, 1
    %p62 = scmp.ne.s32.totalorder %s57, %s59
    %p63 = scmp.eq.s32.totalorder %s23, 0
    %p64 = por %p62, %p63
    %p65 = scmp.ne.s32.totalorder %s57, %s59
    %p66 = scmp.eq.s32.totalorder %s28, 1
    %p67 = por %p65, %p66
    %p68 = scmp.ne.s32.totalorder %s59, %s60
    %p69 = scmp.eq.s32.totalorder %s28, 0
    %p70 = por %p68, %p69
    %p71 = scmp.ne.s32.totalorder %s59, %s60
    %p72 = scmp.eq.s32.totalorder %s29, 1
    %p73 = por %p71, %p72
    %p75 = scmp.ne.s32.totalorder %s60, %s74
    %p76 = scmp.eq.s32.totalorder %s29, 0
    %p77 = por %p75, %p76
    %s79 = sadd.s32 %s78, 1
    %p82 = scmp.eq.s32.totalorder %s23, 1
    %p83 = scmp.ne.s32.totalorder %s78, %s80
    %p84 = scmp.eq.s32.totalorder %s23, 0
    %p85 = por %p83, %p84
    %p86 = scmp.ne.s32.totalorder %s78, %s80
    %p87 = scmp.eq.s32.totalorder %s28, 1
    %p88 = por %p86, %p87
    %p89 = scmp.ne.s32.totalorder %s80, %s81
    %p90 = scmp.eq.s32.totalorder %s28, 0
    %p91 = por %p89, %p90
    %p92 = scmp.ne.s32.totalorder %s80, %s81
    %p93 = scmp.eq.s32.totalorder %s29, 1
    %p94 = por %p92, %p93
    %p96 = scmp.ne.s32.totalorder %s81, %s95
    %p97 = scmp.eq.s32.totalorder %s29, 0
    %p98 = por %p96, %p97
    %s100 = sadd.s32 %s99, 1
    %p103 = scmp.eq.s32.totalorder %s23, 1
    %p104 = scmp.ne.s32.totalorder %s99, %s101
    %p105 = scmp.eq.s32.totalorder %s23, 0
    %p106 = por %p104, %p105
    %p107 = scmp.ne.s32.totalorder %s99, %s101
    %p108 = scmp.eq.s32.totalorder %s28, 1
    %p109 = por %p107, %p108
    %p110 = scmp.ne.s32.totalorder %s101, %s102
    %p111 = scmp.eq.s32.totalorder %s28, 0
    %p112 = por %p110, %p111
    %p113 = scmp.ne.s32.totalorder %s101, %s102
    %p114 = scmp.eq.s32.totalorder %s29, 1
    %p115 = por %p113, %p114
    %p117 = scmp.ne.s32.totalorder %s102, %s116
    %p118 = scmp.eq.s32.totalorder %s29, 0
    %p119 = por %p117, %p118
    %s121 = sadd.s32 %s120, 1
    %p124 = scmp.eq.s32.totalorder %s23, 1
    %p125 = scmp.ne.s32.totalorder %s120, %s122
    %p126 = scmp.eq.s32.totalorder %s23, 0
    %p127 = por %p125, %p126
    %p128 = scmp.ne.s32.totalorder %s120, %s122
    %p129 = scmp.eq.s32.totalorder %s28, 1
    %p130 = por %p128, %p129
    %p131 = scmp.ne.s32.totalorder %s122, %s123
    %p132 = scmp.eq.s32.totalorder %s28, 0
    %p133 = por %p131, %p132
    %p134 = scmp.ne.s32.totalorder %s122, %s123
    %p135 = scmp.eq.s32.totalorder %s29, 1
    %p136 = por %p134, %p135
    %p138 = scmp.ne.s32.totalorder %s123, %s137
    %p139 = scmp.eq.s32.totalorder %s29, 0
    %p140 = por %p138, %p139
    %s142 = sadd.s32 %s141, 1
    %p145 = scmp.eq.s32.totalorder %s23, 1
    %p146 = scmp.ne.s32.totalorder %s141, %s143
    %p147 = scmp.eq.s32.totalorder %s23, 0
    %p148 = por %p146, %p147
    %p149 = scmp.ne.s32.totalorder %s141, %s143
    %p150 = scmp.eq.s32.totalorder %s28, 1
    %p151 = por %p149, %p150
    %p152 = scmp.ne.s32.totalorder %s143, %s144
    %p153 = scmp.eq.s32.totalorder %s28, 0
    %p154 = por %p152, %p153
    %p155 = scmp.ne.s32.totalorder %s143, %s144
    %p156 = scmp.eq.s32.totalorder %s29, 1
    %p157 = por %p155, %p156
    %p159 = scmp.ne.s32.totalorder %s144, %s158
    %p160 = scmp.eq.s32.totalorder %s29, 0
    %p161 = por %p159, %p160
    %s163 = sadd.s32 %s162, 1
    %p166 = scmp.eq.s32.totalorder %s23, 1
    %p167 = scmp.ne.s32.totalorder %s162, %s164
    %p168 = scmp.eq.s32.totalorder %s23, 0
    %p169 = por %p167, %p168
    %p170 = scmp.ne.s32.totalorder %s162, %s164
    %p171 = scmp.eq.s32.totalorder %s28, 1
    %p172 = por %p170, %p171
    %p173 = scmp.ne.s32.totalorder %s164, %s165
    %p174 = scmp.eq.s32.totalorder %s28, 0
    %p175 = por %p173, %p174
    %p176 = scmp.ne.s32.totalorder %s164, %s165
    %p177 = scmp.eq.s32.totalorder %s29, 1
    %p178 = por %p176, %p177
    %p180 = scmp.ne.s32.totalorder %s165, %s179
    %p181 = scmp.eq.s32.totalorder %s29, 0
    %p182 = por %p180, %p181
    %s184 = sadd.s32 %s183, 1
    %p187 = scmp.eq.s32.totalorder %s23, 1
    %p188 = scmp.ne.s32.totalorder %s183, %s185
    %p189 = scmp.eq.s32.totalorder %s23, 0
    %p190 = por %p188, %p189
    %p191 = scmp.ne.s32.totalorder %s183, %s185
    %p192 = scmp.eq.s32.totalorder %s28, 1
    %p193 = por %p191, %p192
    %p194 = scmp.ne.s32.totalorder %s185, %s186
    %p195 = scmp.eq.s32.totalorder %s28, 0
    %p196 = por %p194, %p195
    %p197 = scmp.ne.s32.totalorder %s185, %s186
    %p198 = scmp.eq.s32.totalorder %s29, 1
    %p199 = por %p197, %p198
    %p201 = scmp.ne.s32.totalorder %s186, %s200
    %p202 = scmp.eq.s32.totalorder %s29, 0
    %p203 = por %p201, %p202
    %s205 = sadd.s32 %s204, 1
    %p208 = scmp.eq.s32.totalorder %s23, 1
    %p209 = scmp.ne.s32.totalorder %s204, %s206
    %p210 = scmp.eq.s32.totalorder %s23, 0
    %p211 = por %p209, %p210
    %p212 = scmp.ne.s32.totalorder %s204, %s206
    %p213 = scmp.eq.s32.totalorder %s28, 1
    %p214 = por %p212, %p213
    %p215 = scmp.ne.s32.totalorder %s206, %s207
    %p216 = scmp.eq.s32.totalorder %s28, 0
    %p217 = por %p215, %p216
    %p218 = scmp.ne.s32.totalorder %s206, %s207
    %p219 = scmp.eq.s32.totalorder %s29, 1
    %p220 = por %p218, %p219
    %p222 = scmp.ne.s32.totalorder %s207, %s221
    %p223 = scmp.eq.s32.totalorder %s29, 0
    %p224 = por %p222, %p223
    %s226 = sadd.s32 %s225, 1
    %p229 = scmp.eq.s32.totalorder %s23, 1
    %p230 = scmp.ne.s32.totalorder %s225, %s227
    %p231 = scmp.eq.s32.totalorder %s23, 0
    %p232 = por %p230, %p231
    %p233 = scmp.ne.s32.totalorder %s225, %s227
    %p234 = scmp.eq.s32.totalorder %s28, 1
    %p235 = por %p233, %p234
    %p236 = scmp.ne.s32.totalorder %s227, %s228
    %p237 = scmp.eq.s32.totalorder %s28, 0
    %p238 = por %p236, %p237
    %p239 = scmp.ne.s32.totalorder %s227, %s228
    %p240 = scmp.eq.s32.totalorder %s29, 1
    %p241 = por %p239, %p240
    %p243 = scmp.ne.s32.totalorder %s228, %s242
    %p244 = scmp.eq.s32.totalorder %s29, 0
    %p245 = por %p243, %p244
    %s247 = sadd.s32 %s246, 1
    %p250 = scmp.eq.s32.totalorder %s23, 1
    %p251 = scmp.ne.s32.totalorder %s246, %s248
    %p252 = scmp.eq.s32.totalorder %s23, 0
    %p253 = por %p251, %p252
    %p254 = scmp.ne.s32.totalorder %s246, %s248
    %p255 = scmp.eq.s32.totalorder %s28, 1
    %p256 = por %p254, %p255
    %p257 = scmp.ne.s32.totalorder %s248, %s249
    %p258 = scmp.eq.s32.totalorder %s28, 0
    %p259 = por %p257, %p258
    %p260 = scmp.ne.s32.totalorder %s248, %s249
    %p261 = scmp.eq.s32.totalorder %s29, 1
    %p262 = por %p260, %p261
    %p264 = scmp.ne.s32.totalorder %s249, %s263
    %p265 = scmp.eq.s32.totalorder %s29, 0
    %p266 = por %p264, %p265
    %s268 = sadd.s32 %s267, 1
    %p271 = scmp.eq.s32.totalorder %s23, 1
    %p272 = scmp.ne.s32.totalorder %s267, %s269
    %p273 = scmp.eq.s32.totalorder %s23, 0
    %p274 = por %p272, %p273
    %p275 = scmp.ne.s32.totalorder %s267, %s269
    %p276 = scmp.eq.s32.totalorder %s28, 1
    %p277 = por %p275, %p276
    %p278 = scmp.ne.s32.totalorder %s269, %s270
    %p279 = scmp.eq.s32.totalorder %s28, 0
    %p280 = por %p278, %p279
    %p281 = scmp.ne.s32.totalorder %s269, %s270
    %p282 = scmp.eq.s32.totalorder %s29, 1
    %p283 = por %p281, %p282
    %p285 = scmp.ne.s32.totalorder %s270, %s284
    %p286 = scmp.eq.s32.totalorder %s29, 0
    %p287 = por %p285, %p286
    %s289 = sadd.s32 %s288, 1
    %p292 = scmp.eq.s32.totalorder %s23, 1
    %p293 = scmp.ne.s32.totalorder %s288, %s290
    %p294 = scmp.eq.s32.totalorder %s23, 0
    %p295 = por %p293, %p294
    %p296 = scmp.ne.s32.totalorder %s288, %s290
    %p297 = scmp.eq.s32.totalorder %s28, 1
    %p298 = por %p296, %p297
    %p299 = scmp.ne.s32.totalorder %s290, %s291
    %p300 = scmp.eq.s32.totalorder %s28, 0
    %p301 = por %p299, %p300
    %p302 = scmp.ne.s32.totalorder %s290, %s291
    %p303 = scmp.eq.s32.totalorder %s29, 1
    %p304 = por %p302, %p303
    %p306 = scmp.ne.s32.totalorder %s291, %s305
    %p307 = scmp.eq.s32.totalorder %s29, 0
    %p308 = por %p306, %p307
    %s310 = sadd.s32 %s309, 1
    %p313 = scmp.eq.s32.totalorder %s23, 1
    %p314 = scmp.ne.s32.totalorder %s309, %s311
    %p315 = scmp.eq.s32.totalorder %s23, 0
    %p316 = por %p314, %p315
    %p317 = scmp.ne.s32.totalorder %s309, %s311
    %p318 = scmp.eq.s32.totalorder %s28, 1
    %p319 = por %p317, %p318
    %p320 = scmp.ne.s32.totalorder %s311, %s312
    %p321 = scmp.eq.s32.totalorder %s28, 0
    %p322 = por %p320, %p321
    %p323 = scmp.ne.s32.totalorder %s311, %s312
    %p324 = scmp.eq.s32.totalorder %s29, 1
    %p325 = por %p323, %p324
    %p327 = scmp.ne.s32.totalorder %s312, %s326
    %p328 = scmp.eq.s32.totalorder %s29, 0
    %p329 = por %p327, %p328
    %s331 = sadd.s32 %s330, 1
    %p334 = scmp.eq.s32.totalorder %s23, 1
    %p335 = scmp.ne.s32.totalorder %s330, %s332
    %p336 = scmp.eq.s32.totalorder %s23, 0
    %p337 = por %p335, %p336
    %p338 = scmp.ne.s32.totalorder %s330, %s332
    %p339 = scmp.eq.s32.totalorder %s28, 1
    %p340 = por %p338, %p339
    %p341 = scmp.ne.s32.totalorder %s332, %s333
    %p342 = scmp.eq.s32.totalorder %s28, 0
    %p343 = por %p341, %p342
    %p344 = scmp.ne.s32.totalorder %s332, %s333
    %p345 = scmp.eq.s32.totalorder %s29, 1
    %p346 = por %p344, %p345
    %p348 = scmp.ne.s32.totalorder %s333, %s347
    %p349 = scmp.eq.s32.totalorder %s29, 0
    %p350 = por %p348, %p349
    %s352 = sadd.s32 %s351, 1
    %p355 = scmp.eq.s32.totalorder %s23, 1
    %p356 = scmp.ne.s32.totalorder %s351, %s353
    %p357 = scmp.eq.s32.totalorder %s23, 0
    %p358 = por %p356, %p357
    %p359 = scmp.ne.s32.totalorder %s351, %s353
    %p360 = scmp.eq.s32.totalorder %s28, 1
    %p361 = por %p359, %p360
    %p362 = scmp.ne.s32.totalorder %s353, %s354
    %p363 = scmp.eq.s32.totalorder %s28, 0
    %p364 = por %p362, %p363
    %p365 = scmp.ne.s32.totalorder %s353, %s354
    %p366 = scmp.eq.s32.totalorder %s29, 1
    %p367 = por %p365, %p366
    %p369 = scmp.ne.s32.totalorder %s354, %s368
    %p370 = scmp.eq.s32.totalorder %s29, 0
    %p371 = por %p369, %p370
    %s373 = sadd.s32 %s372, 1
    %p376 = scmp.eq.s32.totalorder %s23, 1
    %p377 = scmp.ne.s32.totalorder %s372, %s374
    %p378 = scmp.eq.s32.totalorder %s23, 0
    %p379 = por %p377, %p378
    %p380 = scmp.ne.s32.totalorder %s372, %s374
    %p381 = scmp.eq.s32.totalorder %s28, 1
    %p382 = por %p380, %p381
    %p383 = scmp.ne.s32.totalorder %s374, %s375
    %p384 = scmp.eq.s32.totalorder %s28, 0
    %p385 = por %p383, %p384
    %p386 = scmp.ne.s32.totalorder %s374, %s375
    %p387 = scmp.eq.s32.totalorder %s29, 1
    %p388 = por %p386, %p387
    %p390 = scmp.ne.s32.totalorder %s375, %s389
    %p391 = scmp.eq.s32.totalorder %s29, 0
    %p392 = por %p390, %p391
    %s393 = ssub.s32 %s23, %s30
    %p394 = scmp.eq.s32.totalorder %s393, 0
    %s396 = sadd.s32 %s395, 1
    %s397 = scalar_select %p394, %s395, %s396
    %p400 = pneg %p394
    %p401 = scmp.eq.s32.totalorder %s23, 1
    %p402 = por %p400, %p401
    %p403 = scmp.ne.s32.totalorder %s395, %s398
    %p404 = scmp.eq.s32.totalorder %s23, 0
    %p405 = por %p403, %p404
    %p406 = scmp.ne.s32.totalorder %s395, %s398
    %p407 = scmp.eq.s32.totalorder %s28, 1
    %p408 = por %p406, %p407
    %p409 = scmp.ne.s32.totalorder %s398, %s399
    %p410 = scmp.eq.s32.totalorder %s28, 0
    %p411 = por %p409, %p410
    %p412 = scmp.ne.s32.totalorder %s398, %s399
    %p413 = scmp.eq.s32.totalorder %s29, 1
    %p414 = por %p412, %p413
    %p416 = scmp.ne.s32.totalorder %s399, %s415
    %p417 = scmp.eq.s32.totalorder %s29, 0
    %p418 = por %p416, %p417
    %p419 = scmp.le.s32.totalorder 1, %s23
    %p420 = scmp.lt.s32.totalorder %s23, 3
    %p421 = pnand %p419, %p420
    %p422 = pneg %p421
    // Predicated region
    $region9: #{detr_forward.1} parent=5 // pred_check
      _
    $region10: #{detr_forward.1} parent=5 // pred_check_branch
      %424 = sbr.rel (%p421) target = $region12
    $region11: #{detr_forward.1} parent=5 // pred_region
      %s425 = ssub.s32 %s23, 1
      // Predicated region
      $region13: #{detr_forward.1} parent=11 // pred_check
        %p426 = pneg %p70
      $region14: #{detr_forward.1} parent=11 // pred_check_branch
        %428 = sbr.rel (%p426) target = $region16
      $region15: #{detr_forward.1} parent=11 // pred_region
        _
      $region16: #{detr_forward.1} parent=11 // pred_fallthru
        _
      // Predicated region
      $region17: #{detr_forward.1} parent=11 // pred_check
        %p429 = pneg %p91
      $region18: #{detr_forward.1} parent=11 // pred_check_branch
        %431 = sbr.rel (%p429) target = $region20
      $region19: #{detr_forward.1} parent=11 // pred_region
        _
      $region20: #{detr_forward.1} parent=11 // pred_fallthru
        _
      // Predicated region
      $region21: #{detr_forward.1} parent=11 // pred_check
        %p432 = pneg %p112
      $region22: #{detr_forward.1} parent=11 // pred_check_branch
        %434 = sbr.rel (%p432) target = $region24
      $region23: #{detr_forward.1} parent=11 // pred_region
        _
      $region24: #{detr_forward.1} parent=11 // pred_fallthru
        _
      // Predicated region
      $region25: #{detr_forward.1} parent=11 // pred_check
        %p435 = pneg %p133
      $region26: #{detr_forward.1} parent=11 // pred_check_branch
        %437 = sbr.rel (%p435) target = $region28
      $region27: #{detr_forward.1} parent=11 // pred_region
        _
      $region28: #{detr_forward.1} parent=11 // pred_fallthru
        _
      // Predicated region
      $region29: #{detr_forward.1} parent=11 // pred_check
        %p438 = pneg %p154
      $region30: #{detr_forward.1} parent=11 // pred_check_branch
        %440 = sbr.rel (%p438) target = $region32
      $region31: #{detr_forward.1} parent=11 // pred_region
        _
      $region32: #{detr_forward.1} parent=11 // pred_fallthru
        _
      // Predicated region
      $region33: #{detr_forward.1} parent=11 // pred_check
        %p441 = pneg %p175
      $region34: #{detr_forward.1} parent=11 // pred_check_branch
        %443 = sbr.rel (%p441) target = $region36
      $region35: #{detr_forward.1} parent=11 // pred_region
        _
      $region36: #{detr_forward.1} parent=11 // pred_fallthru
        _
      // Predicated region
      $region37: #{detr_forward.1} parent=11 // pred_check
        %p444 = pneg %p196
      $region38: #{detr_forward.1} parent=11 // pred_check_branch
        %446 = sbr.rel (%p444) target = $region40
      $region39: #{detr_forward.1} parent=11 // pred_region
        _
      $region40: #{detr_forward.1} parent=11 // pred_fallthru
        _
      // Predicated region
      $region41: #{detr_forward.1} parent=11 // pred_check
        %p447 = pneg %p217
      $region42: #{detr_forward.1} parent=11 // pred_check_branch
        %449 = sbr.rel (%p447) target = $region44
      $region43: #{detr_forward.1} parent=11 // pred_region
        _
      $region44: #{detr_forward.1} parent=11 // pred_fallthru
        _
      // Predicated region
      $region45: #{detr_forward.1} parent=11 // pred_check
        %p450 = pneg %p238
      $region46: #{detr_forward.1} parent=11 // pred_check_branch
        %452 = sbr.rel (%p450) target = $region48
      $region47: #{detr_forward.1} parent=11 // pred_region
        _
      $region48: #{detr_forward.1} parent=11 // pred_fallthru
        _
      // Predicated region
      $region49: #{detr_forward.1} parent=11 // pred_check
        %p453 = pneg %p259
      $region50: #{detr_forward.1} parent=11 // pred_check_branch
        %455 = sbr.rel (%p453) target = $region52
      $region51: #{detr_forward.1} parent=11 // pred_region
        _
      $region52: #{detr_forward.1} parent=11 // pred_fallthru
        _
      // Predicated region
      $region53: #{detr_forward.1} parent=11 // pred_check
        %p456 = pneg %p280
      $region54: #{detr_forward.1} parent=11 // pred_check_branch
        %458 = sbr.rel (%p456) target = $region56
      $region55: #{detr_forward.1} parent=11 // pred_region
        _
      $region56: #{detr_forward.1} parent=11 // pred_fallthru
        _
      // Predicated region
      $region57: #{detr_forward.1} parent=11 // pred_check
        %p459 = pneg %p301
      $region58: #{detr_forward.1} parent=11 // pred_check_branch
        %461 = sbr.rel (%p459) target = $region60
      $region59: #{detr_forward.1} parent=11 // pred_region
        _
      $region60: #{detr_forward.1} parent=11 // pred_fallthru
        _
      // Predicated region
      $region61: #{detr_forward.1} parent=11 // pred_check
        %p462 = pneg %p322
      $region62: #{detr_forward.1} parent=11 // pred_check_branch
        %464 = sbr.rel (%p462) target = $region64
      $region63: #{detr_forward.1} parent=11 // pred_region
        _
      $region64: #{detr_forward.1} parent=11 // pred_fallthru
        _
      // Predicated region
      $region65: #{detr_forward.1} parent=11 // pred_check
        %p465 = pneg %p343
      $region66: #{detr_forward.1} parent=11 // pred_check_branch
        %467 = sbr.rel (%p465) target = $region68
      $region67: #{detr_forward.1} parent=11 // pred_region
        _
      $region68: #{detr_forward.1} parent=11 // pred_fallthru
        _
      // Predicated region
      $region69: #{detr_forward.1} parent=11 // pred_check
        %p468 = pneg %p364
      $region70: #{detr_forward.1} parent=11 // pred_check_branch
        %470 = sbr.rel (%p468) target = $region72
      $region71: #{detr_forward.1} parent=11 // pred_region
        _
      $region72: #{detr_forward.1} parent=11 // pred_fallthru
        _
      // Predicated region
      $region73: #{detr_forward.1} parent=11 // pred_check
        %p471 = pneg %p385
      $region74: #{detr_forward.1} parent=11 // pred_check_branch
        %473 = sbr.rel (%p471) target = $region76
      $region75: #{detr_forward.1} parent=11 // pred_region
        _
      $region76: #{detr_forward.1} parent=11 // pred_fallthru
        _
    $region12: #{detr_forward.1} parent=5 // pred_fallthru
      _
    %p474 = scmp.lt.s32.totalorder %s23, 2
    // Predicated region
    $region77: #{detr_forward.1} parent=5 // pred_check
      %p475 = pneg %p474
    $region78: #{detr_forward.1} parent=5 // pred_check_branch
      %477 = sbr.rel (%p475) target = $region80
    $region79: #{detr_forward.1} parent=5 // pred_region
      // Predicated region
      $region81: #{detr_forward.1} parent=79 // pred_check
        %p478 = pneg %p43
      $region82: #{detr_forward.1} parent=79 // pred_check_branch
        %480 = sbr.rel (%p478) target = $region84
      $region83: #{detr_forward.1} parent=79 // pred_region
        %p481 = scmp.lt.s32.totalorder %s23, 1
        %s482 = scalar_select %p481, %s23, 1
        %s483 = smul.addr %s482, 32
        %s484 = smul.addr %s483, 8
        %s485 = scalar_lea.vmem %s0, %s484
      $region84: #{detr_forward.1} parent=79 // pred_fallthru
        _
    $region80: #{detr_forward.1} parent=5 // pred_fallthru
      _
    %p486 = scmp.le.s32.totalorder 1, %s23
    %p487 = scmp.lt.s32.totalorder %s23, 3
    %p488 = pnand %p486, %p487
    %p489 = pneg %p488
    // Predicated region
    $region85: #{detr_forward.1} parent=5 // pred_check
      _
    $region86: #{detr_forward.1} parent=5 // pred_check_branch
      %491 = sbr.rel (%p488) target = $region88
    $region87: #{detr_forward.1} parent=5 // pred_region
      %s492 = ssub.s32 %s23, 1
      %p493 = scmp.lt.s32.totalorder %s28, 1
      %s494 = scalar_select %p493, %s28, 1
      %s495 = smul.addr %s494, 32
      %s496 = smul.addr %s495, 8
      %s497 = scalar_lea.vmem %s0, %s496
      %p498 = pneg %p49
      %p499 = pneg %p46
      %p500 = pneg %p70
      %p501 = pneg %p67
      %p502 = pneg %p91
      %p503 = pneg %p88
      %p504 = pneg %p112
      %p505 = pneg %p109
      %p506 = pneg %p133
      %p507 = pneg %p130
      %p508 = pneg %p154
      %p509 = pneg %p151
      %p510 = pneg %p175
      %p511 = pneg %p172
      %p512 = pneg %p196
      %p513 = pneg %p193
      %p514 = pneg %p217
      %p515 = pneg %p214
      %p516 = pneg %p238
      %p517 = pneg %p235
      %p518 = pneg %p259
      %p519 = pneg %p256
      %p520 = pneg %p280
      %p521 = pneg %p277
      %p522 = pneg %p301
      %p523 = pneg %p298
      %p524 = pneg %p322
      %p525 = pneg %p319
      %p526 = pneg %p343
      %p527 = pneg %p340
      %p528 = pneg %p364
      %p529 = pneg %p361
      %p530 = pneg %p385
      %p531 = pneg %p382
      %p532 = pneg %p411
      %p533 = pneg %p408
      %p534 = scmp.lt.s32.totalorder %s28, 1
      %s535 = scalar_select %p534, %s28, 1
      %s536 = smul.addr %s535, 8
      %s537 = scalar_lea.vmem %s17, %s536
      %p538 = scmp.lt.s32.totalorder %s28, 1
      %s539 = scalar_select %p538, %s28, 1
      %s540 = smul.addr %s539, 32
      %s541 = smul.addr %s540, 8
      %s542 = scalar_lea.vmem %s0, %s541
      %p543 = scmp.lt.s32.totalorder %s28, 1
      %s544 = scalar_select %p543, %s28, 1
      %s545 = smul.addr %s544, 8
      %s546 = scalar_lea.vmem %s17, %s545
      %v548 = vld [vmem:[%s542] sm:$0xff]
      %v549 = vld [vmem:[%s542 + $0x8] sm:$0xff]
      %v550 = vld [vmem:[%s542 + $0x10] sm:$0xff]
      %v551 = vld [vmem:[%s542 + $0x18] sm:$0xff]
      %v552 = vld [vmem:[%s542 + $0x20] sm:$0xff]
      %v553 = vld [vmem:[%s542 + $0x28] sm:$0xff]
      %v554 = vld [vmem:[%s542 + $0x30] sm:$0xff]
      %v555 = vld [vmem:[%s542 + $0x38] sm:$0xff]
      %v556 = vld [vmem:[%s542 + $0x40] sm:$0xff]
      %v557 = vld [vmem:[%s542 + $0x48] sm:$0xff]
      %v558 = vld [vmem:[%s542 + $0x50] sm:$0xff]
      %v559 = vld [vmem:[%s542 + $0x58] sm:$0xff]
      %v560 = vld [vmem:[%s542 + $0x60] sm:$0xff]
      %v561 = vld [vmem:[%s542 + $0x68] sm:$0xff]
      %v562 = vld [vmem:[%s542 + $0x70] sm:$0xff]
      %v563 = vld [vmem:[%s542 + $0x78] sm:$0xff]
      %v564 = vld [vmem:[%s542 + $0x80] sm:$0xff]
      %v565 = vld [vmem:[%s542 + $0x88] sm:$0xff]
      %v566 = vld [vmem:[%s542 + $0x90] sm:$0xff]
      %v567 = vld [vmem:[%s542 + $0x98] sm:$0xff]
      %v568 = vld [vmem:[%s542 + $0xa0] sm:$0xff]
      %v569 = vld [vmem:[%s542 + $0xa8] sm:$0xff]
      %v570 = vld [vmem:[%s542 + $0xb0] sm:$0xff]
      %v571 = vld [vmem:[%s542 + $0xb8] sm:$0xff]
      %v572 = vld [vmem:[%s542 + $0xc0] sm:$0xff]
      %v573 = vld [vmem:[%s542 + $0xc8] sm:$0xff]
      %v574 = vld [vmem:[%s542 + $0xd0] sm:$0xff]
      %v575 = vld [vmem:[%s542 + $0xd8] sm:$0xff]
      %v576 = vld [vmem:[%s542 + $0xe0] sm:$0xff]
      %v577 = vld [vmem:[%s542 + $0xe8] sm:$0xff]
      %v578 = vld [vmem:[%s542 + $0xf0] sm:$0xff]
      %v579 = vld [vmem:[%s542 + $0xf8] sm:$0xff]
      %v580 = vpack.c.bf16 %v549, %v548
      %v581 = vpack.c.bf16 %v551, %v550
      %v582 = vpack.c.bf16 %v553, %v552
      %v583 = vpack.c.bf16 %v555, %v554
      %v584 = vpack.c.bf16 %v557, %v556
      %v585 = vpack.c.bf16 %v559, %v558
      %v586 = vpack.c.bf16 %v561, %v560
      %v587 = vpack.c.bf16 %v563, %v562
      %v588 = vpack.c.bf16 %v565, %v564
      %v589 = vpack.c.bf16 %v567, %v566
      %v590 = vpack.c.bf16 %v569, %v568
      %v591 = vpack.c.bf16 %v571, %v570
      %v592 = vpack.c.bf16 %v573, %v572
      %v593 = vpack.c.bf16 %v575, %v574
      %v594 = vpack.c.bf16 %v577, %v576
      %v595 = vpack.c.bf16 %v579, %v578
      %v596 = vld [vmem:[%s2] sm:$0xf]
      %v597 = vld [vmem:[%s3] sm:$0x1]
      %v599 = vlaneseq
      %v600 = vshrl.u32 %v599, 7
      %v601 = vsub.s32 0, %v600
      %v602 = vrot.slane %v597, %v601
      %vm604 = vcmask 64512
      %v606 = vsel %vm604, %v580, 0
      %v609 = vsel %vm604, %v581, 0
      %v612 = vsel %vm604, %v582, 0
      %v615 = vsel %vm604, %v583, 0
      %v618 = vsel %vm604, %v584, 0
      %v621 = vsel %vm604, %v585, 0
      %v624 = vsel %vm604, %v586, 0
      %v627 = vsel %vm604, %v587, 0
      %v630 = vsel %vm604, %v588, 0
      %v633 = vsel %vm604, %v589, 0
      %v636 = vsel %vm604, %v590, 0
      %v639 = vsel %vm604, %v591, 0
      %v642 = vsel %vm604, %v592, 0
      %v645 = vsel %vm604, %v593, 0
      %v648 = vsel %vm604, %v594, 0
      %v651 = vsel %vm604, %v595, 0
      %vm653 = vcmask 1043456
      %v655 = vsel %vm653, %v596, 0
      %657 = vmatprep.subr.bf16.mxu0 0
      %658 = vmatpush1.bf16.msra.mxu0 %v655
      %659 = vmatprep.subr.bf16.mxu0 0
      %660 = vmatpush1.bf16.msra.mxu0 0
      %661 = vmatprep.subr.bf16.mxu0 0
      %662 = vmatpush1.bf16.msra.mxu0 0
      %663 = vmatprep.subr.bf16.mxu0 0
      %664 = vmatpush1.bf16.msra.mxu0 0
      %665 = vmatprep.subr.bf16.mxu0 0
      %666 = vmatpush1.bf16.msra.mxu0 0
      %667 = vmatprep.subr.bf16.mxu0 0
      %668 = vmatpush1.bf16.msra.mxu0 0
      %669 = vmatprep.subr.bf16.mxu0 0
      %670 = vmatpush1.bf16.msra.mxu0 0
      %671 = vmatprep.subr.bf16.mxu0 0
      %672 = vmatpush1.bf16.msra.mxu0 0
      %673 = vmatprep.subr.bf16.mxu0 0
      %674 = vmatpush1.bf16.msra.mxu0 0
      %675 = vmatprep.subr.bf16.mxu0 0
      %676 = vmatpush1.bf16.msra.mxu0 0
      %677 = vmatprep.subr.bf16.mxu0 0
      %678 = vmatpush1.bf16.msra.mxu0 0
      %679 = vmatprep.subr.bf16.mxu0 0
      %680 = vmatpush1.bf16.msra.mxu0 0
      %681 = vmatprep.subr.bf16.mxu0 0
      %682 = vmatpush1.bf16.msra.mxu0 0
      %683 = vmatprep.subr.bf16.mxu0 0
      %684 = vmatpush1.bf16.msra.mxu0 0
      %685 = vmatprep.subr.bf16.mxu0 0
      %686 = vmatpush1.bf16.msra.mxu0 0
      %687 = vmatprep.subr.bf16.mxu0 0
      %688 = vmatpush1.bf16.msra.mxu0 0
      %689 = vmatprep.mubr.bf16.mxu0 0
      %690 = vmatmul.mubr.bf16.gmra.mrb[0].mxu0 %v606
      %v691 = vpop.f32.mrb[0].mxu0
      %v692 = vadd.f32 %v602, %v691
      %v693 = vpop.f32.mrb[0].mxu0
      %v694 = vpop.f32.mrb[0].mxu0
      %v695 = vadd.f32 %v602, %v694
      %v696 = vpop.f32.mrb[0].mxu0
      %697 = vmatprep.mubr.bf16.mxu0 0
      %698 = vmatmul.mubr.bf16.gmra.mrb[0].mxu0 %v609
      %v699 = vpop.f32.mrb[0].mxu0
      %v700 = vadd.f32 %v602, %v699
      %v701 = vpop.f32.mrb[0].mxu0
      %v702 = vpop.f32.mrb[0].mxu0
      %v703 = vadd.f32 %v602, %v702
      %v704 = vpop.f32.mrb[0].mxu0
      %705 = vmatprep.mubr.bf16.mxu0 0
      %706 = vmatmul.mubr.bf16.gmra.mrb[0].mxu0 %v612
      %v707 = vpop.f32.mrb[0].mxu0
      %v708 = vadd.f32 %v602, %v707
      %v709 = vpop.f32.mrb[0].mxu0
      %v710 = vpop.f32.mrb[0].mxu0
      %v711 = vadd.f32 %v602, %v710
      %v712 = vpop.f32.mrb[0].mxu0
      %713 = vmatprep.mubr.bf16.mxu0 0
      %714 = vmatmul.mubr.bf16.gmra.mrb[0].mxu0 %v615
      %v715 = vpop.f32.mrb[0].mxu0
      %v716 = vadd.f32 %v602, %v715
      %v717 = vpop.f32.mrb[0].mxu0
      %v718 = vpop.f32.mrb[0].mxu0
      %v719 = vadd.f32 %v602, %v718
      %v720 = vpop.f32.mrb[0].mxu0
      %721 = vmatprep.mubr.bf16.mxu0 0
      %722 = vmatmul.mubr.bf16.gmra.mrb[0].mxu0 %v618
      %v723 = vpop.f32.mrb[0].mxu0
      %v724 = vadd.f32 %v602, %v723
      %v725 = vpop.f32.mrb[0].mxu0
      %v726 = vpop.f32.mrb[0].mxu0
      %v727 = vadd.f32 %v602, %v726
      %v728 = vpop.f32.mrb[0].mxu0
      %729 = vmatprep.mubr.bf16.mxu0 0
      %730 = vmatmul.mubr.bf16.gmra.mrb[0].mxu0 %v621
      %v731 = vpop.f32.mrb[0].mxu0
      %v732 = vadd.f32 %v602, %v731
      %v733 = vpop.f32.mrb[0].mxu0
      %v734 = vpop.f32.mrb[0].mxu0
      %v735 = vadd.f32 %v602, %v734
      %v736 = vpop.f32.mrb[0].mxu0
      %737 = vmatprep.mubr.bf16.mxu0 0
      %738 = vmatmul.mubr.bf16.gmra.mrb[0].mxu0 %v624
      %v739 = vpop.f32.mrb[0].mxu0
      %v740 = vadd.f32 %v602, %v739
      %v741 = vpop.f32.mrb[0].mxu0
      %v742 = vpop.f32.mrb[0].mxu0
      %v743 = vadd.f32 %v602, %v742
      %v744 = vpop.f32.mrb[0].mxu0
      %745 = vmatprep.mubr.bf16.mxu0 0
      %746 = vmatmul.mubr.bf16.gmra.mrb[0].mxu0 %v627
      %v747 = vpop.f32.mrb[0].mxu0
      %v748 = vadd.f32 %v602, %v747
      %v749 = vpop.f32.mrb[0].mxu0
      %v750 = vpop.f32.mrb[0].mxu0
      %v751 = vadd.f32 %v602, %v750
      %v752 = vpop.f32.mrb[0].mxu0
      %753 = vmatprep.mubr.bf16.mxu0 0
      %754 = vmatmul.mubr.bf16.gmra.mrb[0].mxu0 %v630
      %v755 = vpop.f32.mrb[0].mxu0
      %v756 = vadd.f32 %v602, %v755
      %v757 = vpop.f32.mrb[0].mxu0
      %v758 = vpop.f32.mrb[0].mxu0
      %v759 = vadd.f32 %v602, %v758
      %v760 = vpop.f32.mrb[0].mxu0
      %761 = vmatprep.mubr.bf16.mxu0 0
      %762 = vmatmul.mubr.bf16.gmra.mrb[0].mxu0 %v633
      %v763 = vpop.f32.mrb[0].mxu0
      %v764 = vadd.f32 %v602, %v763
      %v765 = vpop.f32.mrb[0].mxu0
      %v766 = vpop.f32.mrb[0].mxu0
      %v767 = vadd.f32 %v602, %v766
      %v768 = vpop.f32.mrb[0].mxu0
      %769 = vmatprep.mubr.bf16.mxu0 0
      %770 = vmatmul.mubr.bf16.gmra.mrb[0].mxu0 %v636
      %v771 = vpop.f32.mrb[0].mxu0
      %v772 = vadd.f32 %v602, %v771
      %v773 = vpop.f32.mrb[0].mxu0
      %v774 = vpop.f32.mrb[0].mxu0
      %v775 = vadd.f32 %v602, %v774
      %v776 = vpop.f32.mrb[0].mxu0
      %777 = vmatprep.mubr.bf16.mxu0 0
      %778 = vmatmul.mubr.bf16.gmra.mrb[0].mxu0 %v639
      %v779 = vpop.f32.mrb[0].mxu0
      %v780 = vadd.f32 %v602, %v779
      %v781 = vpop.f32.mrb[0].mxu0
      %v782 = vpop.f32.mrb[0].mxu0
      %v783 = vadd.f32 %v602, %v782
      %v784 = vpop.f32.mrb[0].mxu0
      %785 = vmatprep.mubr.bf16.mxu0 0
      %786 = vmatmul.mubr.bf16.gmra.mrb[0].mxu0 %v642
      %v787 = vpop.f32.mrb[0].mxu0
      %v788 = vadd.f32 %v602, %v787
      %v789 = vpop.f32.mrb[0].mxu0
      %v790 = vpop.f32.mrb[0].mxu0
      %v791 = vadd.f32 %v602, %v790
      %v792 = vpop.f32.mrb[0].mxu0
      %793 = vmatprep.mubr.bf16.mxu0 0
      %794 = vmatmul.mubr.bf16.gmra.mrb[0].mxu0 %v645
      %v795 = vpop.f32.mrb[0].mxu0
      %v796 = vadd.f32 %v602, %v795
      %v797 = vpop.f32.mrb[0].mxu0
      %v798 = vpop.f32.mrb[0].mxu0
      %v799 = vadd.f32 %v602, %v798
      %v800 = vpop.f32.mrb[0].mxu0
      %801 = vmatprep.mubr.bf16.mxu0 0
      %802 = vmatmul.mubr.bf16.gmra.mrb[0].mxu0 %v648
      %v803 = vpop.f32.mrb[0].mxu0
      %v804 = vadd.f32 %v602, %v803
      %v805 = vpop.f32.mrb[0].mxu0
      %v806 = vpop.f32.mrb[0].mxu0
      %v807 = vadd.f32 %v602, %v806
      %v808 = vpop.f32.mrb[0].mxu0
      %809 = vmatprep.mubr.bf16.mxu0 0
      %810 = vmatmul.mubr.bf16.gmra.mrb[0].mxu0 %v651
      %v811 = vpop.f32.mrb[0].mxu0
      %v812 = vadd.f32 %v602, %v811
      %v813 = vpop.f32.mrb[0].mxu0
      %v814 = vpop.f32.mrb[0].mxu0
      %v815 = vadd.f32 %v602, %v814
      %v816 = vpop.f32.mrb[0].mxu0
      %817 = vdwg.mxu0
      %v818 = vld [vmem:[%s1] sm:$0xff]
      %v819 = vld [vmem:[%s1 + $0x8] sm:$0xff]
      %v820 = vld [vmem:[%s1 + $0x10] sm:$0xff]
      %v821 = vld [vmem:[%s1 + $0x18] sm:$0xff]
      %v822 = vld [vmem:[%s1 + $0x20] sm:$0xff]
      %v823 = vld [vmem:[%s1 + $0x28] sm:$0xff]
      %v824 = vld [vmem:[%s1 + $0x30] sm:$0xff]
      %v825 = vld [vmem:[%s1 + $0x38] sm:$0xff]
      %v826 = vld [vmem:[%s1 + $0x40] sm:$0xff]
      %v827 = vld [vmem:[%s1 + $0x48] sm:$0xff]
      %v828 = vld [vmem:[%s1 + $0x50] sm:$0xff]
      %v829 = vld [vmem:[%s1 + $0x58] sm:$0xff]
      %v830 = vld [vmem:[%s1 + $0x60] sm:$0xff]
      %v831 = vld [vmem:[%s1 + $0x68] sm:$0xff]
      %v832 = vld [vmem:[%s1 + $0x70] sm:$0xff]
      %v833 = vld [vmem:[%s1 + $0x78] sm:$0xff]
      %v834 = vld [vmem:[%s1 + $0x80] sm:$0xff]
      %v835 = vld [vmem:[%s1 + $0x88] sm:$0xff]
      %v836 = vld [vmem:[%s1 + $0x90] sm:$0xff]
      %v837 = vld [vmem:[%s1 + $0x98] sm:$0xff]
      %v838 = vld [vmem:[%s1 + $0xa0] sm:$0xff]
      %v839 = vld [vmem:[%s1 + $0xa8] sm:$0xff]
      %v840 = vld [vmem:[%s1 + $0xb0] sm:$0xff]
      %v841 = vld [vmem:[%s1 + $0xb8] sm:$0xff]
      %v842 = vld [vmem:[%s1 + $0xc0] sm:$0xff]
      %v843 = vld [vmem:[%s1 + $0xc8] sm:$0xff]
      %v844 = vld [vmem:[%s1 + $0xd0] sm:$0xff]
      %v845 = vld [vmem:[%s1 + $0xd8] sm:$0xff]
      %v846 = vld [vmem:[%s1 + $0xe0] sm:$0xff]
      %v847 = vld [vmem:[%s1 + $0xe8] sm:$0xff]
      %v848 = vld [vmem:[%s1 + $0xf0] sm:$0xff]
      %v849 = vld [vmem:[%s1 + $0xf8] sm:$0xff]
      %v850 = vadd.f32 %v692, %v818
      %v851 = vadd.f32 %v695, %v819
      %v852 = vadd.f32 %v700, %v820
      %v853 = vadd.f32 %v703, %v821
      %v854 = vadd.f32 %v708, %v822
      %v855 = vadd.f32 %v711, %v823
      %v856 = vadd.f32 %v716, %v824
      %v857 = vadd.f32 %v719, %v825
      %v858 = vadd.f32 %v724, %v826
      %v859 = vadd.f32 %v727, %v827
      %v860 = vadd.f32 %v732, %v828
      %v861 = vadd.f32 %v735, %v829
      %v862 = vadd.f32 %v740, %v830
      %v863 = vadd.f32 %v743, %v831
      %v864 = vadd.f32 %v748, %v832
      %v865 = vadd.f32 %v751, %v833
      %v866 = vadd.f32 %v756, %v834
      %v867 = vadd.f32 %v759, %v835
      %v868 = vadd.f32 %v764, %v836
      %v869 = vadd.f32 %v767, %v837
      %v870 = vadd.f32 %v772, %v838
      %v871 = vadd.f32 %v775, %v839
      %v872 = vadd.f32 %v780, %v840
      %v873 = vadd.f32 %v783, %v841
      %v874 = vadd.f32 %v788, %v842
      %v875 = vadd.f32 %v791, %v843
      %v876 = vadd.f32 %v796, %v844
      %v877 = vadd.f32 %v799, %v845
      %v878 = vadd.f32 %v804, %v846
      %v879 = vadd.f32 %v807, %v847
      %v880 = vadd.f32 %v812, %v848
      %v881 = vadd.f32 %v815, %v849
      %882 = vxpose.xlu0.b32.start [1/16] %v850, 128
      %883 = vxpose.xlu0.b32.cont [2/16] %v851, 128
      %884 = vxpose.xlu0.b32.cont [3/16] %v852, 128
      %885 = vxpose.xlu0.b32.cont [4/16] %v853, 128
      %886 = vxpose.xlu0.b32.cont [5/16] %v854, 128
      %887 = vxpose.xlu0.b32.cont [6/16] %v855, 128
      %888 = vxpose.xlu0.b32.cont [7/16] %v856, 128
      %889 = vxpose.xlu0.b32.cont [8/16] %v857, 128
      %890 = vxpose.xlu0.b32.cont [9/16] %v858, 128
      %891 = vxpose.xlu0.b32.cont [10/16] %v859, 128
      %892 = vxpose.xlu0.b32.cont [11/16] %v860, 128
      %893 = vxpose.xlu0.b32.cont [12/16] %v861, 128
      %894 = vxpose.xlu0.b32.cont [13/16] %v862, 128
      %895 = vxpose.xlu0.b32.cont [14/16] %v863, 128
      %896 = vxpose.xlu0.b32.cont [15/16] %v864, 128
      %897 = vxpose.xlu0.b32.end [16/16] %v865, 128
      %v898 = vpop.trf.xlu0
      %v899 = vpop.trf.xlu0
      %v900 = vpop.trf.xlu0
      %v901 = vpop.trf.xlu0
      %v902 = vpop.trf.xlu0
      %v903 = vpop.trf.xlu0
      %v904 = vpop.trf.xlu0
      %v905 = vpop.trf.xlu0
      %v906 = vpop.trf.xlu0
      %v907 = vpop.trf.xlu0
      %v908 = vpop.trf.xlu0
      %v909 = vpop.trf.xlu0
      %v910 = vpop.trf.xlu0
      %v911 = vpop.trf.xlu0
      %v912 = vpop.trf.xlu0
      %v913 = vpop.trf.xlu0
      %914 = vxpose.xlu0.b32.start [1/16] %v866, 128
      %915 = vxpose.xlu0.b32.cont [2/16] %v867, 128
      %916 = vxpose.xlu0.b32.cont [3/16] %v868, 128
      %917 = vxpose.xlu0.b32.cont [4/16] %v869, 128
      %918 = vxpose.xlu0.b32.cont [5/16] %v870, 128
      %919 = vxpose.xlu0.b32.cont [6/16] %v871, 128
      %920 = vxpose.xlu0.b32.cont [7/16] %v872, 128
      %921 = vxpose.xlu0.b32.cont [8/16] %v873, 128
      %922 = vxpose.xlu0.b32.cont [9/16] %v874, 128
      %923 = vxpose.xlu0.b32.cont [10/16] %v875, 128
      %924 = vxpose.xlu0.b32.cont [11/16] %v876, 128
      %925 = vxpose.xlu0.b32.cont [12/16] %v877, 128
      %926 = vxpose.xlu0.b32.cont [13/16] %v878, 128
      %927 = vxpose.xlu0.b32.cont [14/16] %v879, 128
      %928 = vxpose.xlu0.b32.cont [15/16] %v880, 128
      %929 = vxpose.xlu0.b32.end [16/16] %v881, 128
      %v930 = vpop.trf.xlu0
      %v931 = vpop.trf.xlu0
      %v932 = vpop.trf.xlu0
      %v933 = vpop.trf.xlu0
      %v934 = vpop.trf.xlu0
      %v935 = vpop.trf.xlu0
      %v936 = vpop.trf.xlu0
      %v937 = vpop.trf.xlu0
      %v938 = vpop.trf.xlu0
      %v939 = vpop.trf.xlu0
      %v940 = vpop.trf.xlu0
      %v941 = vpop.trf.xlu0
      %v942 = vpop.trf.xlu0
      %v943 = vpop.trf.xlu0
      %v944 = vpop.trf.xlu0
      %v945 = vpop.trf.xlu0
      %v946 = vpack.c.bf16 %v899, %v898
      %v947 = vpack.c.bf16 %v931, %v930
      %v948 = vpack.c.bf16 %v901, %v900
      %v949 = vpack.c.bf16 %v933, %v932
      %v950 = vpack.c.bf16 %v695, %v692
      %v951 = vpack.c.bf16 %v703, %v700
      %v952 = vpack.c.bf16 %v711, %v708
      %v953 = vpack.c.bf16 %v719, %v716
      %v954 = vpack.c.bf16 %v727, %v724
      %v955 = vpack.c.bf16 %v735, %v732
      %v956 = vpack.c.bf16 %v743, %v740
      %v957 = vpack.c.bf16 %v751, %v748
      %v958 = vpack.c.bf16 %v759, %v756
      %v959 = vpack.c.bf16 %v767, %v764
      %v960 = vpack.c.bf16 %v775, %v772
      %v961 = vpack.c.bf16 %v783, %v780
      %v962 = vpack.c.bf16 %v791, %v788
      %v963 = vpack.c.bf16 %v799, %v796
      %v964 = vpack.c.bf16 %v807, %v804
      %v965 = vpack.c.bf16 %v815, %v812
      %v966 = vld [vmem:[%s4] sm:$0xff]
      %v967 = vadd.f32 %v966, 0.0
      %v968 = vmul.f32 %v967, 0.17677669
      %v969 = vpack.c.bf16 %v968, %v968
      %vm970 = vcmask 261120
      %v972 = vsel %vm970, %v969, 0
      %974 = vmatprep.subr.bf16.mxu0 %v947
      %975 = vmatpush1.bf16.msra.mxu0 %v946
      %976 = vmatprep.subr.bf16.mxu0 %v949
      %977 = vmatpush1.bf16.msra.mxu0 %v948
      %978 = vmatprep.subr.bf16.mxu0 0
      %979 = vmatpush1.bf16.msra.mxu0 0
      %980 = vmatprep.subr.bf16.mxu0 0
      %981 = vmatpush1.bf16.msra.mxu0 0
      %982 = vmatprep.subr.bf16.mxu0 0
      %983 = vmatpush1.bf16.msra.mxu0 0
      %984 = vmatprep.subr.bf16.mxu0 0
      %985 = vmatpush1.bf16.msra.mxu0 0
      %986 = vmatprep.subr.bf16.mxu0 0
      %987 = vmatpush1.bf16.msra.mxu0 0
      %988 = vmatprep.subr.bf16.mxu0 0
      %989 = vmatpush1.bf16.msra.mxu0 0
      %990 = vmatprep.subr.bf16.mxu0 0
      %991 = vmatpush1.bf16.msra.mxu0 0
      %992 = vmatprep.subr.bf16.mxu0 0
      %993 = vmatpush1.bf16.msra.mxu0 0
      %994 = vmatprep.subr.bf16.mxu0 0
      %995 = vmatpush1.bf16.msra.mxu0 0
      %996 = vmatprep.subr.bf16.mxu0 0
      %997 = vmatpush1.bf16.msra.mxu0 0
      %998 = vmatprep.subr.bf16.mxu0 0
      %999 = vmatpush1.bf16.msra.mxu0 0
      %1000 = vmatprep.subr.bf16.mxu0 0
      %1001 = vmatpush1.bf16.msra.mxu0 0
      %1002 = vmatprep.subr.bf16.mxu0 0
      %1003 = vmatpush1.bf16.msra.mxu0 0
      %1004 = vmatprep.subr.bf16.mxu0 0
      %1005 = vmatpush1.bf16.msra.mxu0 0
      %1006 = vmatprep.mubr.bf16.mxu0 0
      %1007 = vmatmul.mubr.bf16.gmra.mrb[0].mxu0 %v972
      %v1008 = vpop.f32.mrb[0].mxu0
      %v1009 = vadd.f32 0.0, %v1008
      %v1010 = vpop.f32.mrb[0].mxu0
      %v1011 = vadd.f32 0.0, %v1010
      %v1012 = vpop.f32.mrb[0].mxu0
      %v1013 = vpop.f32.mrb[0].mxu0
      %1014 = vdwg.mxu0
      %v1015 = vmax.f32 %v1009, %v1011
      %1016 = vmax.xlane.f32.xlu0 %v1015
      %v1017 = vpop.xlane.xlu0 %1016
      %v1018 = vsub.f32 %v1009, %v1017
      %v1019 = vsub.f32 %v1011, %v1017
      %v1020 = vmul.f32 %v1018, 1.442695
      %v1021 = vpow.pop %v1020
      %v1022 = vmul.f32 %v1019, 1.442695
      %v1023 = vpow.pop %v1022
      %v1024 = vadd.f32 %v1021, %v1023
      %1025 = vadd.xlane.f32.xlu0 %v1024
      %v1026 = vpop.xlane.xlu0 %1025
      %v1027 = vrcp.pop %v1026
      %v1028 = vmul.f32 %v1021, %v1027
      %v1029 = vmul.f32 %v1023, %v1027
      %v1030 = vpack.c.bf16 %v1028, %v1028
      %v1031 = vpack.c.bf16 %v1029, %v1029
      %1032 = vmatprep.subr.bf16.mxu0 0
      %1033 = vmatpush1.bf16.msra.mxu0 %v950
      %1034 = vmatprep.subr.bf16.mxu0 0
      %1035 = vmatpush1.bf16.msra.mxu0 %v951
      %1036 = vmatprep.subr.bf16.mxu0 0
      %1037 = vmatpush1.bf16.msra.mxu0 %v952
      %1038 = vmatprep.subr.bf16.mxu0 0
      %1039 = vmatpush1.bf16.msra.mxu0 %v953
      %1040 = vmatprep.subr.bf16.mxu0 0
      %1041 = vmatpush1.bf16.msra.mxu0 %v954
      %1042 = vmatprep.subr.bf16.mxu0 0
      %1043 = vmatpush1.bf16.msra.mxu0 %v955
      %1044 = vmatprep.subr.bf16.mxu0 0
      %1045 = vmatpush1.bf16.msra.mxu0 %v956
      %1046 = vmatprep.subr.bf16.mxu0 0
      %1047 = vmatpush1.bf16.msra.mxu0 %v957
      %1048 = vmatprep.subr.bf16.mxu0 0
      %1049 = vmatpush1.bf16.msra.mxu0 %v958
      %1050 = vmatprep.subr.bf16.mxu0 0
      %1051 = vmatpush1.bf16.msra.mxu0 %v959
      %1052 = vmatprep.subr.bf16.mxu0 0
      %1053 = vmatpush1.bf16.msra.mxu0 %v960
      %1054 = vmatprep.subr.bf16.mxu0 0
      %1055 = vmatpush1.bf16.msra.mxu0 %v961
      %1056 = vmatprep.subr.bf16.mxu0 0
      %1057 = vmatpush1.bf16.msra.mxu0 %v962
      %1058 = vmatprep.subr.bf16.mxu0 0
      %1059 = vmatpush1.bf16.msra.mxu0 %v963
      %1060 = vmatprep.subr.bf16.mxu0 0
      %1061 = vmatpush1.bf16.msra.mxu0 %v964
      %1062 = vmatprep.subr.bf16.mxu0 0
      %1063 = vmatpush1.bf16.msra.mxu0 %v965
      %1064 = vmatprep.mubr.bf16.mxu0 %v1031
      %1065 = vmatmul.mubr.bf16.gmra.mrb[0].mxu0 %v1030
      %v1066 = vpop.f32.mrb[0].mxu0
      %v1067 = vadd.f32 0.0, %v1066
      %v1068 = vpop.f32.mrb[0].mxu0
      %v1069 = vpop.f32.mrb[0].mxu0
      %v1070 = vpop.f32.mrb[0].mxu0
      %1071 = vdwg.mxu0
      %v1072 = vpack.c.bf16 %v1067, %v1067
      %v1073 = vld [vmem:[%s5] sm:$0xf]
      %v1074 = vld [vmem:[%s5 + $0x4] sm:$0xf]
      %v1075 = vld [vmem:[%s5 + $0x8] sm:$0xf]
      %v1076 = vld [vmem:[%s5 + $0xc] sm:$0xf]
      %v1077 = vld [vmem:[%s6] sm:$0x1]
      %v1079 = vlaneseq
      %v1080 = vshrl.u32 %v1079, 7
      %v1081 = vsub.s32 0, %v1080
      %v1082 = vrot.slane %v1077, %v1081
      %v1088 = vunpack.c.l.b16 %v1073
      %v1089 = vunpack.c.l.b16 %v1074
      %v1090 = vunpack.c.l.b16 %v1075
      %v1091 = vunpack.c.l.b16 %v1076
      %v1092 = vpack.c.b16 %v1089, %v1088
      %v1093 = vpack.c.b16 %v1091, %v1090
      %v1097 = vsel %vm970, %v1072, 0
      %1099 = vmatprep.subr.bf16.mxu0 0
      %1100 = vmatpush1.bf16.msra.mxu0 %v1092
      %1101 = vmatprep.subr.bf16.mxu0 0
      %1102 = vmatpush1.bf16.msra.mxu0 %v1093
      %1103 = vmatprep.subr.bf16.mxu0 0
      %1104 = vmatpush1.bf16.msra.mxu0 0
      %1105 = vmatprep.subr.bf16.mxu0 0
      %1106 = vmatpush1.bf16.msra.mxu0 0
      %1107 = vmatprep.subr.bf16.mxu0 0
      %1108 = vmatpush1.bf16.msra.mxu0 0
      %1109 = vmatprep.subr.bf16.mxu0 0
      %1110 = vmatpush1.bf16.msra.mxu0 0
      %1111 = vmatprep.subr.bf16.mxu0 0
      %1112 = vmatpush1.bf16.msra.mxu0 0
      %1113 = vmatprep.subr.bf16.mxu0 0
      %1114 = vmatpush1.bf16.msra.mxu0 0
      %1115 = vmatprep.subr.bf16.mxu0 0
      %1116 = vmatpush1.bf16.msra.mxu0 0
      %1117 = vmatprep.subr.bf16.mxu0 0
      %1118 = vmatpush1.bf16.msra.mxu0 0
      %1119 = vmatprep.subr.bf16.mxu0 0
      %1120 = vmatpush1.bf16.msra.mxu0 0
      %1121 = vmatprep.subr.bf16.mxu0 0
      %1122 = vmatpush1.bf16.msra.mxu0 0
      %1123 = vmatprep.subr.bf16.mxu0 0
      %1124 = vmatpush1.bf16.msra.mxu0 0
      %1125 = vmatprep.subr.bf16.mxu0 0
      %1126 = vmatpush1.bf16.msra.mxu0 0
      %1127 = vmatprep.subr.bf16.mxu0 0
      %1128 = vmatpush1.bf16.msra.mxu0 0
      %1129 = vmatprep.subr.bf16.mxu0 0
      %1130 = vmatpush1.bf16.msra.mxu0 0
      %1131 = vmatprep.mubr.bf16.mxu0 0
      %1132 = vmatmul.mubr.bf16.gmra.mrb[0].mxu0 %v1097
      %v1133 = vpop.f32.mrb[0].mxu0
      %v1134 = vadd.f32 %v1082, %v1133
      %v1135 = vpop.f32.mrb[0].mxu0
      %v1136 = vpop.f32.mrb[0].mxu0
      %v1137 = vpop.f32.mrb[0].mxu0
      %1138 = vdwg.mxu0
      %v1139 = vmax.f32 %v1134, 0.0
      %v1140 = vpack.c.bf16 %v1139, %v1139
      %v1141 = vld [vmem:[%s7] sm:$0xf]
      %v1142 = vld [vmem:[%s7 + $0x4] sm:$0xf]
      %v1143 = vld [vmem:[%s7 + $0x8] sm:$0xf]
      %v1144 = vld [vmem:[%s7 + $0xc] sm:$0xf]
      %v1145 = vld [vmem:[%s7 + $0x10] sm:$0xf]
      %v1146 = vld [vmem:[%s7 + $0x14] sm:$0xf]
      %v1147 = vld [vmem:[%s7 + $0x18] sm:$0xf]
      %v1148 = vld [vmem:[%s7 + $0x1c] sm:$0xf]
      %v1149 = vld [vmem:[%s8] sm:$0x1]
      %v1151 = vlaneseq
      %v1152 = vshrl.u32 %v1151, 7
      %v1153 = vsub.s32 0, %v1152
      %v1154 = vrot.slane %v1149, %v1153
      %v1164 = vunpack.c.l.b16 %v1141
      %v1165 = vunpack.c.l.b16 %v1142
      %v1166 = vunpack.c.l.b16 %v1143
      %v1167 = vunpack.c.l.b16 %v1144
      %v1168 = vunpack.c.l.b16 %v1145
      %v1169 = vunpack.c.l.b16 %v1146
      %v1170 = vunpack.c.l.b16 %v1147
      %v1171 = vunpack.c.l.b16 %v1148
      %v1172 = vpack.c.b16 %v1165, %v1164
      %v1173 = vpack.c.b16 %v1167, %v1166
      %v1174 = vpack.c.b16 %v1169, %v1168
      %v1175 = vpack.c.b16 %v1171, %v1170
      %vm1180 = vcmask 523264
      %v1182 = vsel %vm1180, %v1140, 0
      %1184 = vmatprep.subr.bf16.mxu0 0
      %1185 = vmatpush1.bf16.msra.mxu0 %v1172
      %1186 = vmatprep.subr.bf16.mxu0 0
      %1187 = vmatpush1.bf16.msra.mxu0 %v1173
      %1188 = vmatprep.subr.bf16.mxu0 0
      %1189 = vmatpush1.bf16.msra.mxu0 %v1174
      %1190 = vmatprep.subr.bf16.mxu0 0
      %1191 = vmatpush1.bf16.msra.mxu0 %v1175
      %1192 = vmatprep.subr.bf16.mxu0 0
      %1193 = vmatpush1.bf16.msra.mxu0 0
      %1194 = vmatprep.subr.bf16.mxu0 0
      %1195 = vmatpush1.bf16.msra.mxu0 0
      %1196 = vmatprep.subr.bf16.mxu0 0
      %1197 = vmatpush1.bf16.msra.mxu0 0
      %1198 = vmatprep.subr.bf16.mxu0 0
      %1199 = vmatpush1.bf16.msra.mxu0 0
      %1200 = vmatprep.subr.bf16.mxu0 0
      %1201 = vmatpush1.bf16.msra.mxu0 0
      %1202 = vmatprep.subr.bf16.mxu0 0
      %1203 = vmatpush1.bf16.msra.mxu0 0
      %1204 = vmatprep.subr.bf16.mxu0 0
      %1205 = vmatpush1.bf16.msra.mxu0 0
      %1206 = vmatprep.subr.bf16.mxu0 0
      %1207 = vmatpush1.bf16.msra.mxu0 0
      %1208 = vmatprep.subr.bf16.mxu0 0
      %1209 = vmatpush1.bf16.msra.mxu0 0
      %1210 = vmatprep.subr.bf16.mxu0 0
      %1211 = vmatpush1.bf16.msra.mxu0 0
      %1212 = vmatprep.subr.bf16.mxu0 0
      %1213 = vmatpush1.bf16.msra.mxu0 0
      %1214 = vmatprep.subr.bf16.mxu0 0
      %1215 = vmatpush1.bf16.msra.mxu0 0
      %1216 = vmatprep.mubr.bf16.mxu0 0
      %1217 = vmatmul.mubr.bf16.gmra.mrb[0].mxu0 %v1182
      %v1218 = vpop.f32.mrb[0].mxu0
      %v1219 = vadd.f32 %v1154, %v1218
      %v1220 = vpop.f32.mrb[0].mxu0
      %v1221 = vpop.f32.mrb[0].mxu0
      %v1222 = vpop.f32.mrb[0].mxu0
      %1223 = vdwg.mxu0
      %v1224 = vadd.f32 %v1067, %v1219
      %v1225 = vadd.f32 %v1224, %v966
      %v1226 = vmul.f32 %v1225, 0.17677669
      %v1227 = vpack.c.bf16 %v1226, %v1226
      %v1229 = vsel %vm970, %v1227, 0
      %1231 = vmatprep.subr.bf16.mxu0 %v947
      %1232 = vmatpush1.bf16.msra.mxu0 %v946
      %1233 = vmatprep.subr.bf16.mxu0 %v949
      %1234 = vmatpush1.bf16.msra.mxu0 %v948
      %1235 = vmatprep.subr.bf16.mxu0 0
      %1236 = vmatpush1.bf16.msra.mxu0 0
      %1237 = vmatprep.subr.bf16.mxu0 0
      %1238 = vmatpush1.bf16.msra.mxu0 0
      %1239 = vmatprep.subr.bf16.mxu0 0
      %1240 = vmatpush1.bf16.msra.mxu0 0
      %1241 = vmatprep.subr.bf16.mxu0 0
      %1242 = vmatpush1.bf16.msra.mxu0 0
      %1243 = vmatprep.subr.bf16.mxu0 0
      %1244 = vmatpush1.bf16.msra.mxu0 0
      %1245 = vmatprep.subr.bf16.mxu0 0
      %1246 = vmatpush1.bf16.msra.mxu0 0
      %1247 = vmatprep.subr.bf16.mxu0 0
      %1248 = vmatpush1.bf16.msra.mxu0 0
      %1249 = vmatprep.subr.bf16.mxu0 0
      %1250 = vmatpush1.bf16.msra.mxu0 0
      %1251 = vmatprep.subr.bf16.mxu0 0
      %1252 = vmatpush1.bf16.msra.mxu0 0
      %1253 = vmatprep.subr.bf16.mxu0 0
      %1254 = vmatpush1.bf16.msra.mxu0 0
      %1255 = vmatprep.subr.bf16.mxu0 0
      %1256 = vmatpush1.bf16.msra.mxu0 0
      %1257 = vmatprep.subr.bf16.mxu0 0
      %1258 = vmatpush1.bf16.msra.mxu0 0
      %1259 = vmatprep.subr.bf16.mxu0 0
      %1260 = vmatpush1.bf16.msra.mxu0 0
      %1261 = vmatprep.subr.bf16.mxu0 0
      %1262 = vmatpush1.bf16.msra.mxu0 0
      %1263 = vmatprep.mubr.bf16.mxu0 0
      %1264 = vmatmul.mubr.bf16.gmra.mrb[0].mxu0 %v1229
      %v1265 = vpop.f32.mrb[0].mxu0
      %v1266 = vadd.f32 0.0, %v1265
      %v1267 = vpop.f32.mrb[0].mxu0
      %v1268 = vadd.f32 0.0, %v1267
      %v1269 = vpop.f32.mrb[0].mxu0
      %v1270 = vpop.f32.mrb[0].mxu0
      %1271 = vdwg.mxu0
      %v1272 = vmax.f32 %v1266, %v1268
      %1273 = vmax.xlane.f32.xlu0 %v1272
      %v1274 = vpop.xlane.xlu0 %1273
      %v1275 = vsub.f32 %v1266, %v1274
      %v1276 = vsub.f32 %v1268, %v1274
      %v1277 = vmul.f32 %v1275, 1.442695
      %v1278 = vpow.pop %v1277
      %v1279 = vmul.f32 %v1276, 1.442695
      %v1280 = vpow.pop %v1279
      %v1281 = vadd.f32 %v1278, %v1280
      %1282 = vadd.xlane.f32.xlu0 %v1281
      %v1283 = vpop.xlane.xlu0 %1282
      %v1284 = vrcp.pop %v1283
      %v1285 = vmul.f32 %v1278, %v1284
      %v1286 = vmul.f32 %v1280, %v1284
      %v1287 = vpack.c.bf16 %v1285, %v1285
      %v1288 = vpack.c.bf16 %v1286, %v1286
      %1289 = vmatprep.subr.bf16.mxu0 0
      %1290 = vmatpush1.bf16.msra.mxu0 %v950
      %1291 = vmatprep.subr.bf16.mxu0 0
      %1292 = vmatpush1.bf16.msra.mxu0 %v951
      %1293 = vmatprep.subr.bf16.mxu0 0
      %1294 = vmatpush1.bf16.msra.mxu0 %v952
      %1295 = vmatprep.subr.bf16.mxu0 0
      %1296 = vmatpush1.bf16.msra.mxu0 %v953
      %1297 = vmatprep.subr.bf16.mxu0 0
      %1298 = vmatpush1.bf16.msra.mxu0 %v954
      %1299 = vmatprep.subr.bf16.mxu0 0
      %1300 = vmatpush1.bf16.msra.mxu0 %v955
      %1301 = vmatprep.subr.bf16.mxu0 0
      %1302 = vmatpush1.bf16.msra.mxu0 %v956
      %1303 = vmatprep.subr.bf16.mxu0 0
      %1304 = vmatpush1.bf16.msra.mxu0 %v957
      %1305 = vmatprep.subr.bf16.mxu0 0
      %1306 = vmatpush1.bf16.msra.mxu0 %v958
      %1307 = vmatprep.subr.bf16.mxu0 0
      %1308 = vmatpush1.bf16.msra.mxu0 %v959
      %1309 = vmatprep.subr.bf16.mxu0 0
      %1310 = vmatpush1.bf16.msra.mxu0 %v960
      %1311 = vmatprep.subr.bf16.mxu0 0
      %1312 = vmatpush1.bf16.msra.mxu0 %v961
      %1313 = vmatprep.subr.bf16.mxu0 0
      %1314 = vmatpush1.bf16.msra.mxu0 %v962
      %1315 = vmatprep.subr.bf16.mxu0 0
      %1316 = vmatpush1.bf16.msra.mxu0 %v963
      %1317 = vmatprep.subr.bf16.mxu0 0
      %1318 = vmatpush1.bf16.msra.mxu0 %v964
      %1319 = vmatprep.subr.bf16.mxu0 0
      %1320 = vmatpush1.bf16.msra.mxu0 %v965
      %1321 = vmatprep.mubr.bf16.mxu0 %v1288
      %1322 = vmatmul.mubr.bf16.gmra.mrb[0].mxu0 %v1287
      %v1323 = vpop.f32.mrb[0].mxu0
      %v1324 = vadd.f32 0.0, %v1323
      %v1325 = vpop.f32.mrb[0].mxu0
      %v1326 = vpop.f32.mrb[0].mxu0
      %v1327 = vpop.f32.mrb[0].mxu0
      %1328 = vdwg.mxu0
      %v1329 = vadd.f32 %v1224, %v1324
      %v1330 = vpack.c.bf16 %v1329, %v1329
      %s1331 = scalar_lea.vmem %s5, 16
      %v1332 = vld [vmem:[%s1331] sm:$0xf]
      %v1333 = vld [vmem:[%s1331 + $0x4] sm:$0xf]
      %v1334 = vld [vmem:[%s1331 + $0x8] sm:$0xf]
      %v1335 = vld [vmem:[%s1331 + $0xc] sm:$0xf]
      %s1336 = scalar_lea.vmem %s6, 1
      %v1337 = vld [vmem:[%s1336] sm:$0x1]
      %v1339 = vlaneseq
      %v1340 = vshrl.u32 %v1339, 7
      %v1341 = vsub.s32 0, %v1340
      %v1342 = vrot.slane %v1337, %v1341
      %v1348 = vunpack.c.l.b16 %v1332
      %v1349 = vunpack.c.l.b16 %v1333
      %v1350 = vunpack.c.l.b16 %v1334
      %v1351 = vunpack.c.l.b16 %v1335
      %v1352 = vpack.c.b16 %v1349, %v1348
      %v1353 = vpack.c.b16 %v1351, %v1350
      %v1357 = vsel %vm970, %v1330, 0
      %1359 = vmatprep.subr.bf16.mxu0 0
      %1360 = vmatpush1.bf16.msra.mxu0 %v1352
      %1361 = vmatprep.subr.bf16.mxu0 0
      %1362 = vmatpush1.bf16.msra.mxu0 %v1353
      %1363 = vmatprep.subr.bf16.mxu0 0
      %1364 = vmatpush1.bf16.msra.mxu0 0
      %1365 = vmatprep.subr.bf16.mxu0 0
      %1366 = vmatpush1.bf16.msra.mxu0 0
      %1367 = vmatprep.subr.bf16.mxu0 0
      %1368 = vmatpush1.bf16.msra.mxu0 0
      %1369 = vmatprep.subr.bf16.mxu0 0
      %1370 = vmatpush1.bf16.msra.mxu0 0
      %1371 = vmatprep.subr.bf16.mxu0 0
      %1372 = vmatpush1.bf16.msra.mxu0 0
      %1373 = vmatprep.subr.bf16.mxu0 0
      %1374 = vmatpush1.bf16.msra.mxu0 0
      %1375 = vmatprep.subr.bf16.mxu0 0
      %1376 = vmatpush1.bf16.msra.mxu0 0
      %1377 = vmatprep.subr.bf16.mxu0 0
      %1378 = vmatpush1.bf16.msra.mxu0 0
      %1379 = vmatprep.subr.bf16.mxu0 0
      %1380 = vmatpush1.bf16.msra.mxu0 0
      %1381 = vmatprep.subr.bf16.mxu0 0
      %1382 = vmatpush1.bf16.msra.mxu0 0
      %1383 = vmatprep.subr.bf16.mxu0 0
      %1384 = vmatpush1.bf16.msra.mxu0 0
      %1385 = vmatprep.subr.bf16.mxu0 0
      %1386 = vmatpush1.bf16.msra.mxu0 0
      %1387 = vmatprep.subr.bf16.mxu0 0
      %1388 = vmatpush1.bf16.msra.mxu0 0
      %1389 = vmatprep.subr.bf16.mxu0 0
      %1390 = vmatpush1.bf16.msra.mxu0 0
      %1391 = vmatprep.mubr.bf16.mxu0 0
      %1392 = vmatmul.mubr.bf16.gmra.mrb[0].mxu0 %v1357
      %v1393 = vpop.f32.mrb[0].mxu0
      %v1394 = vadd.f32 %v1342, %v1393
      %v1395 = vpop.f32.mrb[0].mxu0
      %v1396 = vpop.f32.mrb[0].mxu0
      %v1397 = vpop.f32.mrb[0].mxu0
      %1398 = vdwg.mxu0
      %v1399 = vmax.f32 %v1394, 0.0
      %v1400 = vpack.c.bf16 %v1399, %v1399
      %s1401 = scalar_lea.vmem %s7, 32
      %v1402 = vld [vmem:[%s1401] sm:$0xf]
      %v1403 = vld [vmem:[%s1401 + $0x4] sm:$0xf]
      %v1404 = vld [vmem:[%s1401 + $0x8] sm:$0xf]
      %v1405 = vld [vmem:[%s1401 + $0xc] sm:$0xf]
      %v1406 = vld [vmem:[%s1401 + $0x10] sm:$0xf]
      %v1407 = vld [vmem:[%s1401 + $0x14] sm:$0xf]
      %v1408 = vld [vmem:[%s1401 + $0x18] sm:$0xf]
      %v1409 = vld [vmem:[%s1401 + $0x1c] sm:$0xf]
      %s1410 = scalar_lea.vmem %s8, 1
      %v1411 = vld [vmem:[%s1410] sm:$0x1]
      %v1413 = vlaneseq
      %v1414 = vshrl.u32 %v1413, 7
      %v1415 = vsub.s32 0, %v1414
      %v1416 = vrot.slane %v1411, %v1415
      %v1426 = vunpack.c.l.b16 %v1402
      %v1427 = vunpack.c.l.b16 %v1403
      %v1428 = vunpack.c.l.b16 %v1404
      %v1429 = vunpack.c.l.b16 %v1405
      %v1430 = vunpack.c.l.b16 %v1406
      %v1431 = vunpack.c.l.b16 %v1407
      %v1432 = vunpack.c.l.b16 %v1408
      %v1433 = vunpack.c.l.b16 %v1409
      %v1434 = vpack.c.b16 %v1427, %v1426
      %v1435 = vpack.c.b16 %v1429, %v1428
      %v1436 = vpack.c.b16 %v1431, %v1430
      %v1437 = vpack.c.b16 %v1433, %v1432
      %v1443 = vsel %vm1180, %v1400, 0
      %1445 = vmatprep.subr.bf16.mxu0 0
      %1446 = vmatpush1.bf16.msra.mxu0 %v1434
      %1447 = vmatprep.subr.bf16.mxu0 0
      %1448 = vmatpush1.bf16.msra.mxu0 %v1435
      %1449 = vmatprep.subr.bf16.mxu0 0
      %1450 = vmatpush1.bf16.msra.mxu0 %v1436
      %1451 = vmatprep.subr.bf16.mxu0 0
      %1452 = vmatpush1.bf16.msra.mxu0 %v1437
      %1453 = vmatprep.subr.bf16.mxu0 0
      %1454 = vmatpush1.bf16.msra.mxu0 0
      %1455 = vmatprep.subr.bf16.mxu0 0
      %1456 = vmatpush1.bf16.msra.mxu0 0
      %1457 = vmatprep.subr.bf16.mxu0 0
      %1458 = vmatpush1.bf16.msra.mxu0 0
      %1459 = vmatprep.subr.bf16.mxu0 0
      %1460 = vmatpush1.bf16.msra.mxu0 0
      %1461 = vmatprep.subr.bf16.mxu0 0
      %1462 = vmatpush1.bf16.msra.mxu0 0
      %1463 = vmatprep.subr.bf16.mxu0 0
      %1464 = vmatpush1.bf16.msra.mxu0 0
      %1465 = vmatprep.subr.bf16.mxu0 0
      %1466 = vmatpush1.bf16.msra.mxu0 0
      %1467 = vmatprep.subr.bf16.mxu0 0
      %1468 = vmatpush1.bf16.msra.mxu0 0
      %1469 = vmatprep.subr.bf16.mxu0 0
      %1470 = vmatpush1.bf16.msra.mxu0 0
      %1471 = vmatprep.subr.bf16.mxu0 0
      %1472 = vmatpush1.bf16.msra.mxu0 0
      %1473 = vmatprep.subr.bf16.mxu0 0
      %1474 = vmatpush1.bf16.msra.mxu0 0
      %1475 = vmatprep.subr.bf16.mxu0 0
      %1476 = vmatpush1.bf16.msra.mxu0 0
      %1477 = vmatprep.mubr.bf16.mxu0 0
      %1478 = vmatmul.mubr.bf16.gmra.mrb[0].mxu0 %v1443
      %v1479 = vpop.f32.mrb[0].mxu0
      %v1480 = vadd.f32 %v1416, %v1479
      %v1481 = vpop.f32.mrb[0].mxu0
      %v1482 = vpop.f32.mrb[0].mxu0
      %v1483 = vpop.f32.mrb[0].mxu0
      %1484 = vdwg.mxu0
      %v1485 = vadd.f32 %v1329, %v1480
      %v1486 = vpack.c.bf16 %v1485, %v1485
      %v1487 = vld [vmem:[%s9] sm:$0xf]
      %v1488 = vld [vmem:[%s9 + $0x4] sm:$0xf]
      %v1489 = vld [vmem:[%s9 + $0x8] sm:$0xf]
      %v1490 = vld [vmem:[%s9 + $0xc] sm:$0xf]
      %v1491 = vld [vmem:[%s10] sm:$0x1]
      %v1493 = vlaneseq
      %v1494 = vshrl.u32 %v1493, 7
      %v1495 = vsub.s32 0, %v1494
      %v1496 = vrot.slane %v1491, %v1495
      %v1502 = vunpack.c.l.b16 %v1487
      %v1503 = vunpack.c.l.b16 %v1488
      %v1504 = vunpack.c.l.b16 %v1489
      %v1505 = vunpack.c.l.b16 %v1490
      %v1506 = vpack.c.b16 %v1503, %v1502
      %v1507 = vpack.c.b16 %v1505, %v1504
      %v1511 = vsel %vm970, %v1486, 0
      %1513 = vmatprep.subr.bf16.mxu0 0
      %1514 = vmatpush1.bf16.msra.mxu0 %v1506
      %1515 = vmatprep.subr.bf16.mxu0 0
      %1516 = vmatpush1.bf16.msra.mxu0 %v1507
      %1517 = vmatprep.subr.bf16.mxu0 0
      %1518 = vmatpush1.bf16.msra.mxu0 0
      %1519 = vmatprep.subr.bf16.mxu0 0
      %1520 = vmatpush1.bf16.msra.mxu0 0
      %1521 = vmatprep.subr.bf16.mxu0 0
      %1522 = vmatpush1.bf16.msra.mxu0 0
      %1523 = vmatprep.subr.bf16.mxu0 0
      %1524 = vmatpush1.bf16.msra.mxu0 0
      %1525 = vmatprep.subr.bf16.mxu0 0
      %1526 = vmatpush1.bf16.msra.mxu0 0
      %1527 = vmatprep.subr.bf16.mxu0 0
      %1528 = vmatpush1.bf16.msra.mxu0 0
      %1529 = vmatprep.subr.bf16.mxu0 0
      %1530 = vmatpush1.bf16.msra.mxu0 0
      %1531 = vmatprep.subr.bf16.mxu0 0
      %1532 = vmatpush1.bf16.msra.mxu0 0
      %1533 = vmatprep.subr.bf16.mxu0 0
      %1534 = vmatpush1.bf16.msra.mxu0 0
      %1535 = vmatprep.subr.bf16.mxu0 0
      %1536 = vmatpush1.bf16.msra.mxu0 0
      %1537 = vmatprep.subr.bf16.mxu0 0
      %1538 = vmatpush1.bf16.msra.mxu0 0
      %1539 = vmatprep.subr.bf16.mxu0 0
      %1540 = vmatpush1.bf16.msra.mxu0 0
      %1541 = vmatprep.subr.bf16.mxu0 0
      %1542 = vmatpush1.bf16.msra.mxu0 0
      %1543 = vmatprep.subr.bf16.mxu0 0
      %1544 = vmatpush1.bf16.msra.mxu0 0
      %1545 = vmatprep.mubr.bf16.mxu0 0
      %1546 = vmatmul.mubr.bf16.gmra.mrb[0].mxu0 %v1511
      %v1547 = vpop.f32.mrb[0].mxu0
      %v1548 = vadd.f32 %v1496, %v1547
      %v1549 = vpop.f32.mrb[0].mxu0
      %v1550 = vpop.f32.mrb[0].mxu0
      %v1551 = vpop.f32.mrb[0].mxu0
      %1552 = vdwg.mxu0
      %v1553 = vld [vmem:[%s11] sm:$0xf]
      %v1554 = vld [vmem:[%s11 + $0x4] sm:$0xf]
      %v1555 = vld [vmem:[%s11 + $0x8] sm:$0xf]
      %v1556 = vld [vmem:[%s11 + $0xc] sm:$0xf]
      %v1557 = vld [vmem:[%s12] sm:$0x1]
      %v1559 = vlaneseq
      %v1560 = vshrl.u32 %v1559, 7
      %v1561 = vsub.s32 0, %v1560
      %v1562 = vrot.slane %v1557, %v1561
      %v1568 = vunpack.c.l.b16 %v1553
      %v1569 = vunpack.c.l.b16 %v1554
      %v1570 = vunpack.c.l.b16 %v1555
      %v1571 = vunpack.c.l.b16 %v1556
      %v1572 = vpack.c.b16 %v1569, %v1568
      %v1573 = vpack.c.b16 %v1571, %v1570
      %1576 = vmatprep.subr.bf16.mxu0 0
      %1577 = vmatpush1.bf16.msra.mxu0 %v1572
      %1578 = vmatprep.subr.bf16.mxu0 0
      %1579 = vmatpush1.bf16.msra.mxu0 %v1573
      %1580 = vmatprep.subr.bf16.mxu0 0
      %1581 = vmatpush1.bf16.msra.mxu0 0
      %1582 = vmatprep.subr.bf16.mxu0 0
      %1583 = vmatpush1.bf16.msra.mxu0 0
      %1584 = vmatprep.subr.bf16.mxu0 0
      %1585 = vmatpush1.bf16.msra.mxu0 0
      %1586 = vmatprep.subr.bf16.mxu0 0
      %1587 = vmatpush1.bf16.msra.mxu0 0
      %1588 = vmatprep.subr.bf16.mxu0 0
      %1589 = vmatpush1.bf16.msra.mxu0 0
      %1590 = vmatprep.subr.bf16.mxu0 0
      %1591 = vmatpush1.bf16.msra.mxu0 0
      %1592 = vmatprep.subr.bf16.mxu0 0
      %1593 = vmatpush1.bf16.msra.mxu0 0
      %1594 = vmatprep.subr.bf16.mxu0 0
      %1595 = vmatpush1.bf16.msra.mxu0 0
      %1596 = vmatprep.subr.bf16.mxu0 0
      %1597 = vmatpush1.bf16.msra.mxu0 0
      %1598 = vmatprep.subr.bf16.mxu0 0
      %1599 = vmatpush1.bf16.msra.mxu0 0
      %1600 = vmatprep.subr.bf16.mxu0 0
      %1601 = vmatpush1.bf16.msra.mxu0 0
      %1602 = vmatprep.subr.bf16.mxu0 0
      %1603 = vmatpush1.bf16.msra.mxu0 0
      %1604 = vmatprep.subr.bf16.mxu0 0
      %1605 = vmatpush1.bf16.msra.mxu0 0
      %1606 = vmatprep.subr.bf16.mxu0 0
      %1607 = vmatpush1.bf16.msra.mxu0 0
      %1608 = vmatprep.mubr.bf16.mxu0 0
      %1609 = vmatmul.mubr.bf16.gmra.mrb[0].mxu0 %v1511
      %v1610 = vpop.f32.mrb[0].mxu0
      %v1611 = vadd.f32 %v1562, %v1610
      %v1612 = vpop.f32.mrb[0].mxu0
      %v1613 = vpop.f32.mrb[0].mxu0
      %v1614 = vpop.f32.mrb[0].mxu0
      %1615 = vdwg.mxu0
      %v1616 = vmax.f32 %v1611, 0.0
      %v1617 = vpack.c.bf16 %v1616, %v1616
      %v1618 = vld [vmem:[%s13] sm:$0xf]
      %v1619 = vld [vmem:[%s13 + $0x4] sm:$0xf]
      %v1620 = vld [vmem:[%s13 + $0x8] sm:$0xf]
      %v1621 = vld [vmem:[%s13 + $0xc] sm:$0xf]
      %v1622 = vld [vmem:[%s14] sm:$0x1]
      %v1624 = vlaneseq
      %v1625 = vshrl.u32 %v1624, 7
      %v1626 = vsub.s32 0, %v1625
      %v1627 = vrot.slane %v1622, %v1626
      %v1633 = vunpack.c.l.b16 %v1618
      %v1634 = vunpack.c.l.b16 %v1619
      %v1635 = vunpack.c.l.b16 %v1620
      %v1636 = vunpack.c.l.b16 %v1621
      %v1637 = vpack.c.b16 %v1634, %v1633
      %v1638 = vpack.c.b16 %v1636, %v1635
      %v1642 = vsel %vm970, %v1617, 0
      %1644 = vmatprep.subr.bf16.mxu0 0
      %1645 = vmatpush1.bf16.msra.mxu0 %v1637
      %1646 = vmatprep.subr.bf16.mxu0 0
      %1647 = vmatpush1.bf16.msra.mxu0 %v1638
      %1648 = vmatprep.subr.bf16.mxu0 0
      %1649 = vmatpush1.bf16.msra.mxu0 0
      %1650 = vmatprep.subr.bf16.mxu0 0
      %1651 = vmatpush1.bf16.msra.mxu0 0
      %1652 = vmatprep.subr.bf16.mxu0 0
      %1653 = vmatpush1.bf16.msra.mxu0 0
      %1654 = vmatprep.subr.bf16.mxu0 0
      %1655 = vmatpush1.bf16.msra.mxu0 0
      %1656 = vmatprep.subr.bf16.mxu0 0
      %1657 = vmatpush1.bf16.msra.mxu0 0
      %1658 = vmatprep.subr.bf16.mxu0 0
      %1659 = vmatpush1.bf16.msra.mxu0 0
      %1660 = vmatprep.subr.bf16.mxu0 0
      %1661 = vmatpush1.bf16.msra.mxu0 0
      %1662 = vmatprep.subr.bf16.mxu0 0
      %1663 = vmatpush1.bf16.msra.mxu0 0
      %1664 = vmatprep.subr.bf16.mxu0 0
      %1665 = vmatpush1.bf16.msra.mxu0 0
      %1666 = vmatprep.subr.bf16.mxu0 0
      %1667 = vmatpush1.bf16.msra.mxu0 0
      %1668 = vmatprep.subr.bf16.mxu0 0
      %1669 = vmatpush1.bf16.msra.mxu0 0
      %1670 = vmatprep.subr.bf16.mxu0 0
      %1671 = vmatpush1.bf16.msra.mxu0 0
      %1672 = vmatprep.subr.bf16.mxu0 0
      %1673 = vmatpush1.bf16.msra.mxu0 0
      %1674 = vmatprep.subr.bf16.mxu0 0
      %1675 = vmatpush1.bf16.msra.mxu0 0
      %1676 = vmatprep.mubr.bf16.mxu0 0
      %1677 = vmatmul.mubr.bf16.gmra.mrb[0].mxu0 %v1642
      %v1678 = vpop.f32.mrb[0].mxu0
      %v1679 = vadd.f32 %v1627, %v1678
      %v1680 = vpop.f32.mrb[0].mxu0
      %v1681 = vpop.f32.mrb[0].mxu0
      %v1682 = vpop.f32.mrb[0].mxu0
      %1683 = vdwg.mxu0
      %v1684 = vmax.f32 %v1679, 0.0
      %v1685 = vpack.c.bf16 %v1684, %v1684
      %v1686 = vld [vmem:[%s15] sm:$0xf]
      %v1687 = vld [vmem:[%s15 + $0x4] sm:$0xf]
      %v1688 = vld [vmem:[%s15 + $0x8] sm:$0xf]
      %v1689 = vld [vmem:[%s15 + $0xc] sm:$0xf]
      %v1690 = vld [vmem:[%s16] sm:$0x1]
      %v1692 = vlaneseq
      %v1693 = vshrl.u32 %v1692, 7
      %v1694 = vsub.s32 0, %v1693
      %v1695 = vrot.slane %v1690, %v1694
      %v1701 = vunpack.c.l.b16 %v1686
      %v1702 = vunpack.c.l.b16 %v1687
      %v1703 = vunpack.c.l.b16 %v1688
      %v1704 = vunpack.c.l.b16 %v1689
      %v1705 = vpack.c.b16 %v1702, %v1701
      %v1706 = vpack.c.b16 %v1704, %v1703
      %v1710 = vsel %vm970, %v1685, 0
      %1712 = vmatprep.subr.bf16.mxu0 0
      %1713 = vmatpush1.bf16.msra.mxu0 %v1705
      %1714 = vmatprep.subr.bf16.mxu0 0
      %1715 = vmatpush1.bf16.msra.mxu0 %v1706
      %1716 = vmatprep.subr.bf16.mxu0 0
      %1717 = vmatpush1.bf16.msra.mxu0 0
      %1718 = vmatprep.subr.bf16.mxu0 0
      %1719 = vmatpush1.bf16.msra.mxu0 0
      %1720 = vmatprep.subr.bf16.mxu0 0
      %1721 = vmatpush1.bf16.msra.mxu0 0
      %1722 = vmatprep.subr.bf16.mxu0 0
      %1723 = vmatpush1.bf16.msra.mxu0 0
      %1724 = vmatprep.subr.bf16.mxu0 0
      %1725 = vmatpush1.bf16.msra.mxu0 0
      %1726 = vmatprep.subr.bf16.mxu0 0
      %1727 = vmatpush1.bf16.msra.mxu0 0
      %1728 = vmatprep.subr.bf16.mxu0 0
      %1729 = vmatpush1.bf16.msra.mxu0 0
      %1730 = vmatprep.subr.bf16.mxu0 0
      %1731 = vmatpush1.bf16.msra.mxu0 0
      %1732 = vmatprep.subr.bf16.mxu0 0
      %1733 = vmatpush1.bf16.msra.mxu0 0
      %1734 = vmatprep.subr.bf16.mxu0 0
      %1735 = vmatpush1.bf16.msra.mxu0 0
      %1736 = vmatprep.subr.bf16.mxu0 0
      %1737 = vmatpush1.bf16.msra.mxu0 0
      %1738 = vmatprep.subr.bf16.mxu0 0
      %1739 = vmatpush1.bf16.msra.mxu0 0
      %1740 = vmatprep.subr.bf16.mxu0 0
      %1741 = vmatpush1.bf16.msra.mxu0 0
      %1742 = vmatprep.subr.bf16.mxu0 0
      %1743 = vmatpush1.bf16.msra.mxu0 0
      %1744 = vmatprep.mubr.bf16.mxu0 0
      %1745 = vmatmul.mubr.bf16.gmra.mrb[0].mxu0 %v1710
      %v1746 = vpop.f32.mrb[0].mxu0
      %v1747 = vadd.f32 %v1695, %v1746
      %v1748 = vpop.f32.mrb[0].mxu0
      %v1749 = vpop.f32.mrb[0].mxu0
      %v1750 = vpop.f32.mrb[0].mxu0
      %1751 = vdwg.mxu0
      %v1752 = vxor.u32 %v1747, 2147483648
      %v1753 = vmul.f32 %v1752, 1.442695
      %v1754 = vpow.pop %v1753
      %v1755 = vadd.f32 %v1754, 1.0
      %v1756 = vrcp.pop %v1755
      %v1757 = vmul.f32 1.0, %v1756
      %1759 = vrot.lane.b32.xlu0 %v1757, 64
      %v1760 = vpop.permute.xlu0 %1759
      %v1762 = vsel %vm1180, %v1548, %v1760
      %1763 = vst [vmem:[%s546] sm:$0xff] %v1762
      %p1764 = scmp.lt.s32.totalorder %s28, 1
      %s1765 = scalar_select %p1764, %s28, 1
      %s1766 = smul.addr %s1765, 8
      %s1767 = scalar_lea.vmem %s17, %s1766
      // Predicated region
      $region89: #{detr_forward.1} parent=87 // pred_check
        %p1768 = pneg %p408
      $region90: #{detr_forward.1} parent=87 // pred_check_branch
        %1770 = sbr.rel (%p1768) target = $region92
      $region91: #{detr_forward.1} parent=87 // pred_region
        _
      $region92: #{detr_forward.1} parent=87 // pred_fallthru
        _
    $region88: #{detr_forward.1} parent=5 // pred_fallthru
      _
    %p1771 = scmp.le.s32.totalorder 2, %s23
    // Predicated region
    $region93: #{detr_forward.1} parent=5 // pred_check
      %p1772 = pneg %p1771
    $region94: #{detr_forward.1} parent=5 // pred_check_branch
      %1774 = sbr.rel (%p1772) target = $region96
    $region95: #{detr_forward.1} parent=5 // pred_region
      %s1775 = ssub.s32 %s23, 2
      // Predicated region
      $region97: #{detr_forward.1} parent=95 // pred_check
        %p1776 = pneg %p414
      $region98: #{detr_forward.1} parent=95 // pred_check_branch
        %1778 = sbr.rel (%p1776) target = $region100
      $region99: #{detr_forward.1} parent=95 // pred_region
        %p1779 = scmp.lt.s32.totalorder %s29, 1
        %s1780 = scalar_select %p1779, %s29, 1
        %s1781 = smul.addr %s1780, 8
        %s1782 = scalar_lea.vmem %s17, %s1781
      $region100: #{detr_forward.1} parent=95 // pred_fallthru
        _
    $region96: #{detr_forward.1} parent=5 // pred_fallthru
      _
  $region6: #{detr_forward.1} parent=0 // loop_footer
    %s27 = sadd.s32 1, %s23
  $region7: #{detr_forward.1} parent=0 // loop_footer_branch
    %22 = sbr.rel target = $region3
  $region8: #{detr_forward.1} parent=0 // loop_exit
    _

</llo_original>
